<compile_context>
chip_gen: v6e
topology: v6e:2x2x1
jax: 0.10.0
libtpu: 0.0.40
codegen_flags: <defaults>
</compile_context>

<pallas_src>
import functools
import math

import jax
import jax.numpy as jnp
from jax import lax
from jax.experimental import pallas as pl
from jax.experimental.pallas import tpu as pltpu

F32 = jnp.float32
GN_EPS = 1e-5
INV_SIG_EPS = 1e-3
LANE = 128          # full vreg lane width; every kernel channel axis is padded to this
TAB_PAD = 256       # prop_label_enc rows (201) padded up to a multiple of 128

# Whole-array-in-VMEM spec (both kernels are single-invocation, no grid).
_VMEM = pl.BlockSpec(memory_space=pltpu.MemorySpace.VMEM)


def _round_up(x, m):
    return (x + m - 1) // m * m


# ---------------------------------------------------------------------------
# Kernel 1: Conv1d(kernel_size=1) + GroupNorm for ALL feature levels, fused
# ---------------------------------------------------------------------------
def _input_proj_kernel(x_ref, cpack_ref, o_ref, *, t_lens):
    """cpack row layout (all rows zero-padded to 128 lanes):
         [0:128)                        gmat — group-membership matrix scaled by 1/cg
         [128 + l*cin_pad : +cin)       conv weight of level l, (Cin, H) zero-padded
         [abase + 3*l + {0,1,2}]        conv bias / GN gamma / GN beta of level l
    """
    n, _, cin = x_ref.shape
    cin_pad = _round_up(cin, 8)
    nlev = len(t_lens)
    abase = LANE + nlev * cin_pad

    gmat = cpack_ref[0:LANE, :]                                    # (128, 128)

    off = 0
    for l, tl in enumerate(t_lens):                                # static python loop
        w = cpack_ref[LANE + l * cin_pad: LANE + l * cin_pad + cin, :]
        b = cpack_ref[abase + 3 * l + 0: abase + 3 * l + 1, :]
        gamma = cpack_ref[abase + 3 * l + 1: abase + 3 * l + 2, :]
        beta = cpack_ref[abase + 3 * l + 2: abase + 3 * l + 3, :]

        # Conv1d(k=1) == matmul over the channel dim; rows = N*T_l on the MXU.
        x2 = x_ref[:, off:off + tl, :].reshape(n * tl, cin)
        y = (jnp.dot(x2, w, preferred_element_type=F32) + b).reshape(n, tl, LANE)

        # GroupNorm, two-pass (mean, then centered variance) for numerical parity.
        # Padded lanes (>= H) stay exactly 0 by construction of the padded weights.
        inv_t = 1.0 / float(tl)
        s1 = jnp.sum(y, axis=1)                                    # (N, 128) sublane reduce
        mean_h = jnp.dot(s1, gmat, preferred_element_type=F32) * inv_t
        c = y - mean_h[:, None, :]
        ssq = jnp.sum(c * c, axis=1)                               # (N, 128)
        var_h = jnp.dot(ssq, gmat, preferred_element_type=F32) * inv_t
        rstd = lax.rsqrt(var_h + GN_EPS)
        # single full-128-lane (unmasked) store per level chunk
        o_ref[:, off:off + tl, :] = c * rstd[:, None, :] * gamma + beta
        off += tl


def input_proj_fused(x_cat, ip_const, t_lens):
    # x_cat: (N, T_total, Cin) — levels concatenated along T, NTC layout.
    n, t_total, _ = x_cat.shape
    # per-level chunks are sliced at static sublane-aligned row offsets
    assert all(t % 8 == 0 for t in t_lens), "per-level lengths must be multiples of 8"
    kern = functools.partial(_input_proj_kernel,
                             t_lens=tuple(int(t) for t in t_lens))
    return pl.pallas_call(
        kern,
        out_shape=jax.ShapeDtypeStruct((n, t_total, LANE), F32),
        in_specs=[_VMEM, _VMEM],
        out_specs=_VMEM,
    )(x_cat, ip_const)


# ---------------------------------------------------------------------------
# Kernel 2: proposal encoding + label-embedding gather + stand-in decoder +
#           block-diagonal class heads, fully fused (single invocation)
# ---------------------------------------------------------------------------
def _proposal_decoder_kernel(prop_ref, table_ref, enc_ref, dec_ref, out_ref):
    """enc_ref rows: [0:Ptot) per-proposal const row (level emb + box-enc bias +
                     label-0 emb), then wbox_x1, wbox_x2, wscore, bscore.
       dec_ref rows: [0:128) stacked decoder weight (H -> nl*H, padded),
                     [128:256) block-diagonal class weight (nl*H -> nl*C, padded),
                     [256] decoder bias row, [257] class bias row.
       out lanes:    [0:128) box_src (real 0:H), [128:256) hs slab (real 0:nl*H),
                     [256:384) logits slab (real 0:nl*C)."""
    n, ptot, _ = prop_ref.shape
    rows = n * ptot
    p2 = prop_ref[...].reshape(rows, 4)
    b1, b2, sc = p2[:, 1:2], p2[:, 2:3], p2[:, 3:4]

    crow = enc_ref[0:ptot, :]
    wbox0 = enc_ref[ptot + 0: ptot + 1, :]
    wbox1 = enc_ref[ptot + 1: ptot + 2, :]
    wscore = enc_ref[ptot + 2: ptot + 3, :]
    bscore = enc_ref[ptot + 3: ptot + 4, :]

    # prop_score_enc(score) — shared by box_src and the query label embedding,
    # exactly as in the reference forward.
    score_emb = sc * wscore + bscore                               # (rows, 128)
    crow_b = jnp.concatenate([crow] * n, axis=0)                   # (rows, 128)
    # box_src = box_enc(box) + label_enc(0) + score_enc(score) + level_enc[level]
    box_src = b1 * wbox0 + b2 * wbox1 + score_emb + crow_b

    # prop_label_enc(label) gather as one-hot MXU matmul; labels are truncated
    # like `.long()` and clamped to the valid table range [0, 200].
    labels = jnp.clip(p2[:, 0:1].astype(jnp.int32), 0, 200)
    ids = lax.broadcasted_iota(jnp.int32, (rows, TAB_PAD), 1)
    onehot = (labels == ids).astype(F32)                           # (rows, 256)
    q_label = jnp.dot(onehot, table_ref[...], preferred_element_type=F32) + score_emb

    # stand-in decoder (all nl layers stacked) + class heads (block-diagonal),
    # both zero-padded to 128 output lanes so stores stay unmasked.
    wdec = dec_ref[0:LANE, :]
    wcls = dec_ref[LANE:2 * LANE, :]
    bdec = dec_ref[2 * LANE + 0: 2 * LANE + 1, :]
    bcls = dec_ref[2 * LANE + 1: 2 * LANE + 2, :]
    h_all = jnp.tanh(jnp.dot(q_label, wdec, preferred_element_type=F32) + bdec)
    logit_all = jnp.dot(h_all, wcls, preferred_element_type=F32) + bcls

    out_ref[...] = jnp.concatenate([box_src, h_all, logit_all],
                                   axis=1).reshape(n, ptot, 3 * LANE)


def proposal_decode(prop_cat, table_pad, enc_pack, dec_pack, *, hidden, nl, ncls):
    n, ptot, _ = prop_cat.shape
    slab = pl.pallas_call(
        _proposal_decoder_kernel,
        out_shape=jax.ShapeDtypeStruct((n, ptot, 3 * LANE), F32),
        in_specs=[_VMEM] * 4,
        out_specs=_VMEM,
    )(prop_cat, table_pad, enc_pack, dec_pack)
    box_src = slab[:, :, 0:hidden]
    hs = jnp.transpose(
        slab[:, :, LANE:LANE + nl * hidden].reshape(n, ptot, nl, hidden), (2, 0, 1, 3))
    logits = jnp.transpose(
        slab[:, :, 2 * LANE:2 * LANE + nl * ncls].reshape(n, ptot, nl, ncls), (2, 0, 1, 3))
    return box_src, hs, logits


# ---------------------------------------------------------------------------
# Plain-JAX helpers
# ---------------------------------------------------------------------------
def inverse_sigmoid(x, eps=INV_SIG_EPS):
    x = jnp.clip(x, 0.0, 1.0)
    return jnp.log(jnp.maximum(x, eps)) - jnp.log(jnp.maximum(1.0 - x, eps))


# ---------------------------------------------------------------------------
# One-time constant packing (review: hoist all derived constants out of forward)
# ---------------------------------------------------------------------------
def prepare_consts(params, *, input_dim, hidden_dim, num_classes, num_dec_layers,
                   props_per_level):
    h, c, nl = hidden_dim, num_classes, num_dec_layers
    # TODO(synk): at production sizes (nl*H, nl*C > 128) switch to a gridded,
    # tiled layout instead of single 128-lane slabs.
    assert h <= LANE and nl * h <= LANE and nl * c <= LANE
    num_groups = max(min(h // 8, 32), 1)
    cg = h // num_groups
    cin = input_dim
    cin_pad = _round_up(cin, 8)

    # ---- kernel-1 constant pack ------------------------------------------
    ch = jnp.arange(LANE)
    same_group = ((ch[:, None] // cg == ch[None, :] // cg)
                  & (ch[:, None] < h) & (ch[None, :] < h))
    gmat = jnp.where(same_group, 1.0 / cg, 0.0).astype(F32)       # (128, 128)
    blocks = [gmat]
    for (w, _, _, _) in params["input_proj"]:
        blocks.append(jnp.zeros((cin_pad, LANE), F32).at[:cin, :h].set(w))
    for (_, b, gamma, beta) in params["input_proj"]:
        aff = jnp.zeros((3, LANE), F32)
        aff = aff.at[0, :h].set(b).at[1, :h].set(gamma).at[2, :h].set(beta)
        blocks.append(aff)
    ip_const = jnp.concatenate(blocks, axis=0)

    # ---- kernel-2 constant packs -----------------------------------------
    table_pad = jnp.zeros((TAB_PAD, LANE), F32).at[:201, :h].set(params["prop_label_w"])

    crow = jnp.concatenate(
        [jnp.broadcast_to((params["prop_level_w"][l] + params["prop_box_b"]
                           + params["prop_label_w"][0])[None, :], (p, h))
         for l, p in enumerate(props_per_level)], axis=0)          # (Ptot, H)
    ptot = crow.shape[0]
    enc_pack = jnp.zeros((ptot + 4, LANE), F32)
    enc_pack = enc_pack.at[:ptot, :h].set(crow)
    enc_pack = enc_pack.at[ptot + 0, :h].set(params["prop_box_w"][0])
    enc_pack = enc_pack.at[ptot + 1, :h].set(params["prop_box_w"][1])
    enc_pack = enc_pack.at[ptot + 2, :h].set(params["prop_score_w"])
    enc_pack = enc_pack.at[ptot + 3, :h].set(params["prop_score_b"])

    # stacked decoder weight (H -> nl*H) and block-diagonal class head (nl*H -> nl*C)
    wdec = jnp.transpose(params["dec_w"], (1, 0, 2)).reshape(h, nl * h)
    wdec_pad = jnp.zeros((LANE, LANE), F32).at[:h, :nl * h].set(wdec)
    bdec_pad = jnp.zeros((1, LANE), F32).at[0, :nl * h].set(params["dec_b"].reshape(-1))
    wcls_pad = jnp.zeros((LANE, LANE), F32)
    for l in range(nl):
        wcls_pad = wcls_pad.at[l * h:(l + 1) * h, l * c:(l + 1) * c].set(params["cls_w"][l])
    bcls_pad = jnp.zeros((1, LANE), F32).at[0, :nl * c].set(params["cls_b"].reshape(-1))
    dec_pack = jnp.concatenate([wdec_pad, wcls_pad, bdec_pad, bcls_pad], axis=0)

    return {"ip_const": ip_const, "table_pad": table_pad,
            "enc_pack": enc_pack, "dec_pack": dec_pack}


# ---------------------------------------------------------------------------
# Full DINO forward (eval mode: dn_number path inactive)
# ---------------------------------------------------------------------------
def dino_forward(consts, features, proposals, pos_1d_embeds, pos_2d_embeds, *, cfg):
    n = features[0].shape[0]
    hidden = cfg["hidden_dim"]
    nl = cfg["num_dec_layers"]
    ncls = cfg["num_classes"]
    t_lens = tuple(int(f.shape[2]) for f in features)
    p_lens = tuple(int(p.shape[1]) for p in proposals)

    # positional embeddings: one resize per UNIQUE target length, broadcast to batch
    # (the reference repeats to batch first; per-sample results are identical).
    c1, c2 = pos_1d_embeds.shape[1], pos_2d_embeds.shape[1]
    pos1_cache, pos2_cache = {}, {}
    for t in sorted(set(t_lens) | set(p_lens)):
        r1 = jax.image.resize(pos_1d_embeds, (1, c1, t), method="linear", antialias=False)
        r2 = jax.image.resize(pos_2d_embeds, (1, c2, t, t), method="linear", antialias=False)
        pos1_cache[t] = jnp.broadcast_to(r1, (n, c1, t))
        pos2_cache[t] = jnp.broadcast_to(r2, (n, c2, t, t))

    # ---- Pallas call #1: fused Conv1d(k=1)+GroupNorm over ALL levels ------
    x_cat = jnp.transpose(jnp.concatenate(features, axis=2), (0, 2, 1))  # NCT -> NTC
    src_slab = input_proj_fused(x_cat, consts["ip_const"], t_lens)

    srcs, pos_1d, pos_2d = [], [], []
    off = 0
    for t in t_lens:
        srcs.append(src_slab[:, off:off + t, :hidden][..., None])   # (N, T_l, H, 1)
        pos_1d.append(pos1_cache[t])
        pos_2d.append(pos2_cache[t])
        off += t

    # eval path: attn_mask = dn_meta = None (prepare_for_cdn is training-only).
    prop_cat = jnp.concatenate(proposals, axis=1)                    # (N, Ptot, 4)

    # ---- Pallas call #2: proposal encode + stand-in decoder + class heads --
    box_src_cat, hs, outputs_class = proposal_decode(
        prop_cat, consts["table_pad"], consts["enc_pack"], consts["dec_pack"],
        hidden=hidden, nl=nl, ncls=ncls)

    box_srcs, box_pos_1d, box_pos_2d = [], [], []
    off = 0
    for p in p_lens:
        box_srcs.append(box_src_cat[:, off:off + p, :][..., None])   # (N, P_l, H, 1)
        box_pos_1d.append(pos1_cache[p])
        box_pos_2d.append(pos2_cache[p])
        off += p

    # prop_query_bbox / inverse_sigmoid: width-4 elementwise, kept in plain JAX.
    b1, b2 = prop_cat[..., 1:2], prop_cat[..., 2:3]
    q_bbox = inverse_sigmoid(jnp.concatenate([b1, b2, (b1 + b2) * 0.5, b2 - b1], axis=-1))

    # TODO(synk): real transformer not provided; init_reference is the stand-in's
    # sigmoid(inverse_sigmoid(box)), hs comes from the fused linear+tanh layers.
    init_reference = jax.nn.sigmoid(q_bbox)
    # NOTE: `hs[0] += label_enc.weight[0,0]*0.0` in the reference is a numerical no-op.
    outputs_coord = jnp.broadcast_to(init_reference[None], (nl,) + init_reference.shape)

    out = {"pred_logits": outputs_class[-1], "pred_boxes": outputs_coord[-1]}
    out["aux_outputs"] = [{"pred_logits": a, "pred_boxes": b}
                          for a, b in zip(outputs_class[:-1], outputs_coord[:-1])]
    out["dn_meta"] = None
    return out, hs, srcs, box_srcs, pos_1d, pos_2d, box_pos_1d, box_pos_2d


# ---------------------------------------------------------------------------
# Deterministic synthetic parameters & inputs
# ---------------------------------------------------------------------------
def make_params(key, *, input_dim, hidden_dim, num_classes, num_levels,
                num_dec_layers, dn_labelbook_size=100):
    keys = iter(jax.random.split(key, 32))
    h = hidden_dim
    input_proj_params = []
    for _ in range(num_levels):
        w = jax.random.normal(next(keys), (input_dim, h), F32) * 0.1
        input_proj_params.append((w, jnp.zeros((h,), F32),
                                  jnp.ones((h,), F32), jnp.zeros((h,), F32)))
    bias_value = -math.log((1 - 0.01) / 0.01)
    return {
        "input_proj": input_proj_params,
        "prop_box_w": jax.random.normal(next(keys), (2, h), F32) * 0.1,
        "prop_box_b": jnp.zeros((h,), F32),
        "prop_label_w": jax.random.normal(next(keys), (201, h), F32) * 0.02,
        "prop_score_w": jax.random.normal(next(keys), (h,), F32) * 0.1,
        "prop_score_b": jnp.zeros((h,), F32),
        "prop_level_w": jax.random.normal(next(keys), (6, h), F32) * 0.02,
        "label_enc_w": jax.random.normal(
            next(keys), (dn_labelbook_size + 1, h), F32) * 0.02,  # only used by dn path
        "dec_w": jax.random.normal(next(keys), (num_dec_layers, h, h), F32) * 0.1,
        "dec_b": jnp.zeros((num_dec_layers, h), F32),
        "cls_w": jax.random.normal(next(keys), (num_dec_layers, h, num_classes), F32) * 0.1,
        "cls_b": jnp.full((num_dec_layers, num_classes), bias_value, F32),
    }


if __name__ == "__main__":
    N = 2
    INPUT_DIM = 16
    HIDDEN = 32
    NUM_CLASSES = 8
    NUM_LEVELS = 2
    NUM_DEC_LAYERS = 3
    FEAT_LENS = [16, 8]
    PROPS_PER_LEVEL = 8

    root = jax.random.PRNGKey(0)
    k_par, k_feat, k_prop, k_pos = jax.random.split(root, 4)
    params = make_params(k_par, input_dim=INPUT_DIM, hidden_dim=HIDDEN,
                         num_classes=NUM_CLASSES, num_levels=NUM_LEVELS,
                         num_dec_layers=NUM_DEC_LAYERS)
    consts = prepare_consts(params, input_dim=INPUT_DIM, hidden_dim=HIDDEN,
                            num_classes=NUM_CLASSES, num_dec_layers=NUM_DEC_LAYERS,
                            props_per_level=[PROPS_PER_LEVEL] * NUM_LEVELS)
    cfg = {"hidden_dim": HIDDEN, "num_classes": NUM_CLASSES,
           "num_dec_layers": NUM_DEC_LAYERS}

    # features: list of (N, input_dim, T_l) — PyTorch Conv1d NCT layout
    fkeys = jax.random.split(k_feat, NUM_LEVELS)
    features = [jax.random.normal(fkeys[l], (N, INPUT_DIM, FEAT_LENS[l]), F32)
                for l in range(NUM_LEVELS)]

    # proposals: list of (N, P_l, 4) with columns [label, x1, x2, score]
    proposals = []
    pkeys = jax.random.split(k_prop, NUM_LEVELS)
    for l in range(NUM_LEVELS):
        ka, kb, kc, kd = jax.random.split(pkeys[l], 4)
        labels = jax.random.randint(ka, (N, PROPS_PER_LEVEL, 1), 0, 200).astype(F32)
        x1 = jax.random.uniform(kb, (N, PROPS_PER_LEVEL, 1), F32, 0.05, 0.5)
        width = jax.random.uniform(kc, (N, PROPS_PER_LEVEL, 1), F32, 0.05, 0.4)
        x2 = jnp.clip(x1 + width, 0.0, 0.95)
        score = jax.random.uniform(kd, (N, PROPS_PER_LEVEL, 1), F32, 0.0, 1.0)
        proposals.append(jnp.concatenate([labels, x1, x2, score], axis=-1))

    kp1, kp2 = jax.random.split(k_pos)
    pos_1d_embeds = jax.random.normal(kp1, (1, HIDDEN, 64), F32)
    pos_2d_embeds = jax.random.normal(kp2, (1, HIDDEN, 16, 16), F32)

    fwd = jax.jit(functools.partial(dino_forward, cfg=cfg))
    out, hs, srcs, box_srcs, *_ = fwd(consts, features, proposals,
                                      pos_1d_embeds, pos_2d_embeds)
    jax.block_until_ready((out["pred_logits"], out["pred_boxes"], hs,
                           srcs[0], box_srcs[0]))

    PTOT = NUM_LEVELS * PROPS_PER_LEVEL
    assert out["pred_logits"].shape == (N, PTOT, NUM_CLASSES)
    assert out["pred_boxes"].shape == (N, PTOT, 4)
    assert len(out["aux_outputs"]) == NUM_DEC_LAYERS - 1
    assert hs.shape == (NUM_DEC_LAYERS, N, PTOT, HIDDEN)
    assert srcs[0].shape == (N, FEAT_LENS[0], HIDDEN, 1)
    assert box_srcs[0].shape == (N, PROPS_PER_LEVEL, HIDDEN, 1)
    print("KERNEL_OK")
</pallas_src>

<mosaic_0001>
module attributes {stable_mosaic.version = 11 : i64} {
  func.func @_input_proj_kernel(%arg0: memref<2x24x16xf32, #tpu.memory_space<vmem>>, %arg1: memref<166x128xf32, #tpu.memory_space<vmem>>, %arg2: memref<2x24x128xf32, #tpu.memory_space<vmem>>) attributes {dimension_semantics = [], scalar_prefetch = 0 : i64, scratch_operands = 0 : i64, tpu.core_type = #tpu.core_type<tc>} {
    %c0 = arith.constant 0 : index
    %c0_0 = arith.constant 0 : index
    %0 = vector.load %arg1[%c0, %c0_0] : memref<166x128xf32, #tpu.memory_space<vmem>>, vector<128x128xf32>
    %c128 = arith.constant 128 : index
    %c0_1 = arith.constant 0 : index
    %1 = vector.load %arg1[%c128, %c0_1] : memref<166x128xf32, #tpu.memory_space<vmem>>, vector<16x128xf32>
    %c160 = arith.constant 160 : index
    %c0_2 = arith.constant 0 : index
    %2 = vector.load %arg1[%c160, %c0_2] : memref<166x128xf32, #tpu.memory_space<vmem>>, vector<1x128xf32>
    %c161 = arith.constant 161 : index
    %c0_3 = arith.constant 0 : index
    %3 = vector.load %arg1[%c161, %c0_3] : memref<166x128xf32, #tpu.memory_space<vmem>>, vector<1x128xf32>
    %c162 = arith.constant 162 : index
    %c0_4 = arith.constant 0 : index
    %4 = vector.load %arg1[%c162, %c0_4] : memref<166x128xf32, #tpu.memory_space<vmem>>, vector<1x128xf32>
    %c0_5 = arith.constant 0 : index
    %c0_6 = arith.constant 0 : index
    %c0_7 = arith.constant 0 : index
    %5 = vector.load %arg0[%c0_5, %c0_6, %c0_7] : memref<2x24x16xf32, #tpu.memory_space<vmem>>, vector<2x16x16xf32>
    %6 = vector.shape_cast %5 : vector<2x16x16xf32> to vector<32x16xf32>
    %cst = arith.constant dense<0.000000e+00> : vector<32x128xf32>
    %7 = tpu.matmul %6, %1, %cst {dimension_numbers = #tpu.dot_dimension_numbers<[1], [0], [0], [1], [0, 0, 1, 1], [], []>} : vector<32x16xf32>, vector<16x128xf32>, vector<32x128xf32> -> vector<32x128xf32>
    %8 = vector.broadcast %2 : vector<1x128xf32> to vector<32x128xf32>
    %9 = arith.addf %7, %8 : vector<32x128xf32>
    %10 = vector.shape_cast %9 : vector<32x128xf32> to vector<2x16x128xf32>
    %cst_8 = arith.constant dense<0.000000e+00> : vector<2x128xf32>
    %11 = vector.multi_reduction <add>, %10, %cst_8 [1] : vector<2x16x128xf32> to vector<2x128xf32>
    %cst_9 = arith.constant dense<0.000000e+00> : vector<2x128xf32>
    %12 = tpu.matmul %11, %0, %cst_9 {dimension_numbers = #tpu.dot_dimension_numbers<[1], [0], [0], [1], [0, 0, 1, 1], [], []>} : vector<2x128xf32>, vector<128x128xf32>, vector<2x128xf32> -> vector<2x128xf32>
    %cst_10 = arith.constant 6.250000e-02 : f32
    %13 = vector.broadcast %cst_10 : f32 to vector<2x128xf32>
    %14 = arith.mulf %12, %13 : vector<2x128xf32>
    %15 = vector.shape_cast %14 : vector<2x128xf32> to vector<2x1x128xf32>
    %16 = vector.broadcast %15 : vector<2x1x128xf32> to vector<2x16x128xf32>
    %17 = arith.subf %10, %16 : vector<2x16x128xf32>
    %18 = arith.mulf %17, %17 : vector<2x16x128xf32>
    %cst_11 = arith.constant dense<0.000000e+00> : vector<2x128xf32>
    %19 = vector.multi_reduction <add>, %18, %cst_11 [1] : vector<2x16x128xf32> to vector<2x128xf32>
    %cst_12 = arith.constant dense<0.000000e+00> : vector<2x128xf32>
    %20 = tpu.matmul %19, %0, %cst_12 {dimension_numbers = #tpu.dot_dimension_numbers<[1], [0], [0], [1], [0, 0, 1, 1], [], []>} : vector<2x128xf32>, vector<128x128xf32>, vector<2x128xf32> -> vector<2x128xf32>
    %cst_13 = arith.constant 6.250000e-02 : f32
    %21 = vector.broadcast %cst_13 : f32 to vector<2x128xf32>
    %22 = arith.mulf %20, %21 : vector<2x128xf32>
    %cst_14 = arith.constant 9.99999974E-6 : f32
    %23 = vector.broadcast %cst_14 : f32 to vector<2x128xf32>
    %24 = arith.addf %22, %23 : vector<2x128xf32>
    %25 = math.rsqrt %24 : vector<2x128xf32>
    %26 = vector.shape_cast %25 : vector<2x128xf32> to vector<2x1x128xf32>
    %27 = vector.broadcast %26 : vector<2x1x128xf32> to vector<2x16x128xf32>
    %28 = arith.mulf %17, %27 : vector<2x16x128xf32>
    %29 = vector.shape_cast %3 : vector<1x128xf32> to vector<1x1x128xf32>
    %30 = vector.broadcast %29 : vector<1x1x128xf32> to vector<2x16x128xf32>
    %31 = arith.mulf %28, %30 : vector<2x16x128xf32>
    %32 = vector.shape_cast %4 : vector<1x128xf32> to vector<1x1x128xf32>
    %33 = vector.broadcast %32 : vector<1x1x128xf32> to vector<2x16x128xf32>
    %34 = arith.addf %31, %33 : vector<2x16x128xf32>
    %c0_15 = arith.constant 0 : index
    %c0_16 = arith.constant 0 : index
    %c0_17 = arith.constant 0 : index
    %35 = vector.load %arg2[%c0_15, %c0_16, %c0_17] : memref<2x24x128xf32, #tpu.memory_space<vmem>>, vector<2x16x128xf32>
    tpu.vector_store %arg2[%c0_15, %c0_16, %c0_17], %34 {strides = array<i32>} : memref<2x24x128xf32, #tpu.memory_space<vmem>>, vector<2x16x128xf32>,
    %c144 = arith.constant 144 : index
    %c0_18 = arith.constant 0 : index
    %36 = vector.load %arg1[%c144, %c0_18] : memref<166x128xf32, #tpu.memory_space<vmem>>, vector<16x128xf32>
    %c163 = arith.constant 163 : index
    %c0_19 = arith.constant 0 : index
    %37 = vector.load %arg1[%c163, %c0_19] : memref<166x128xf32, #tpu.memory_space<vmem>>, vector<1x128xf32>
    %c164 = arith.constant 164 : index
    %c0_20 = arith.constant 0 : index
    %38 = vector.load %arg1[%c164, %c0_20] : memref<166x128xf32, #tpu.memory_space<vmem>>, vector<1x128xf32>
    %c165 = arith.constant 165 : index
    %c0_21 = arith.constant 0 : index
    %39 = vector.load %arg1[%c165, %c0_21] : memref<166x128xf32, #tpu.memory_space<vmem>>, vector<1x128xf32>
    %c0_22 = arith.constant 0 : index
    %c16 = arith.constant 16 : index
    %c0_23 = arith.constant 0 : index
    %40 = vector.load %arg0[%c0_22, %c16, %c0_23] : memref<2x24x16xf32, #tpu.memory_space<vmem>>, vector<2x8x16xf32>
    %41 = vector.shape_cast %40 : vector<2x8x16xf32> to vector<16x16xf32>
    %cst_24 = arith.constant dense<0.000000e+00> : vector<16x128xf32>
    %42 = tpu.matmul %41, %36, %cst_24 {dimension_numbers = #tpu.dot_dimension_numbers<[1], [0], [0], [1], [0, 0, 1, 1], [], []>} : vector<16x16xf32>, vector<16x128xf32>, vector<16x128xf32> -> vector<16x128xf32>
    %43 = vector.broadcast %37 : vector<1x128xf32> to vector<16x128xf32>
    %44 = arith.addf %42, %43 : vector<16x128xf32>
    %45 = vector.shape_cast %44 : vector<16x128xf32> to vector<2x8x128xf32>
    %cst_25 = arith.constant dense<0.000000e+00> : vector<2x128xf32>
    %46 = vector.multi_reduction <add>, %45, %cst_25 [1] : vector<2x8x128xf32> to vector<2x128xf32>
    %cst_26 = arith.constant dense<0.000000e+00> : vector<2x128xf32>
    %47 = tpu.matmul %46, %0, %cst_26 {dimension_numbers = #tpu.dot_dimension_numbers<[1], [0], [0], [1], [0, 0, 1, 1], [], []>} : vector<2x128xf32>, vector<128x128xf32>, vector<2x128xf32> -> vector<2x128xf32>
    %cst_27 = arith.constant 1.250000e-01 : f32
    %48 = vector.broadcast %cst_27 : f32 to vector<2x128xf32>
    %49 = arith.mulf %47, %48 : vector<2x128xf32>
    %50 = vector.shape_cast %49 : vector<2x128xf32> to vector<2x1x128xf32>
    %51 = vector.broadcast %50 : vector<2x1x128xf32> to vector<2x8x128xf32>
    %52 = arith.subf %45, %51 : vector<2x8x128xf32>
    %53 = arith.mulf %52, %52 : vector<2x8x128xf32>
    %cst_28 = arith.constant dense<0.000000e+00> : vector<2x128xf32>
    %54 = vector.multi_reduction <add>, %53, %cst_28 [1] : vector<2x8x128xf32> to vector<2x128xf32>
    %cst_29 = arith.constant dense<0.000000e+00> : vector<2x128xf32>
    %55 = tpu.matmul %54, %0, %cst_29 {dimension_numbers = #tpu.dot_dimension_numbers<[1], [0], [0], [1], [0, 0, 1, 1], [], []>} : vector<2x128xf32>, vector<128x128xf32>, vector<2x128xf32> -> vector<2x128xf32>
    %cst_30 = arith.constant 1.250000e-01 : f32
    %56 = vector.broadcast %cst_30 : f32 to vector<2x128xf32>
    %57 = arith.mulf %55, %56 : vector<2x128xf32>
    %cst_31 = arith.constant 9.99999974E-6 : f32
    %58 = vector.broadcast %cst_31 : f32 to vector<2x128xf32>
    %59 = arith.addf %57, %58 : vector<2x128xf32>
    %60 = math.rsqrt %59 : vector<2x128xf32>
    %61 = vector.shape_cast %60 : vector<2x128xf32> to vector<2x1x128xf32>
    %62 = vector.broadcast %61 : vector<2x1x128xf32> to vector<2x8x128xf32>
    %63 = arith.mulf %52, %62 : vector<2x8x128xf32>
    %64 = vector.shape_cast %38 : vector<1x128xf32> to vector<1x1x128xf32>
    %65 = vector.broadcast %64 : vector<1x1x128xf32> to vector<2x8x128xf32>
    %66 = arith.mulf %63, %65 : vector<2x8x128xf32>
    %67 = vector.shape_cast %39 : vector<1x128xf32> to vector<1x1x128xf32>
    %68 = vector.broadcast %67 : vector<1x1x128xf32> to vector<2x8x128xf32>
    %69 = arith.addf %66, %68 : vector<2x8x128xf32>
    %c0_32 = arith.constant 0 : index
    %c16_33 = arith.constant 16 : index
    %c0_34 = arith.constant 0 : index
    %70 = vector.load %arg2[%c0_32, %c16_33, %c0_34] : memref<2x24x128xf32, #tpu.memory_space<vmem>>, vector<2x8x128xf32>
    tpu.vector_store %arg2[%c0_32, %c16_33, %c0_34], %69 {strides = array<i32>} : memref<2x24x128xf32, #tpu.memory_space<vmem>>, vector<2x8x128xf32>,
    return
  }
}

module attributes {stable_mosaic.version = 11 : i64} {
  func.func @_proposal_decoder_kernel(%arg0: memref<2x16x4xf32, #tpu.memory_space<vmem>>, %arg1: memref<256x128xf32, #tpu.memory_space<vmem>>, %arg2: memref<20x128xf32, #tpu.memory_space<vmem>>, %arg3: memref<258x128xf32, #tpu.memory_space<vmem>>, %arg4: memref<2x16x384xf32, #tpu.memory_space<vmem>>) attributes {dimension_semantics = [], scalar_prefetch = 0 : i64, scratch_operands = 0 : i64, tpu.core_type = #tpu.core_type<tc>} {
    %c0 = arith.constant 0 : index
    %c0_0 = arith.constant 0 : index
    %c0_1 = arith.constant 0 : index
    %0 = vector.load %arg0[%c0, %c0_0, %c0_1] : memref<2x16x4xf32, #tpu.memory_space<vmem>>, vector<2x16x4xf32>
    %1 = vector.shape_cast %0 : vector<2x16x4xf32> to vector<32x4xf32>
    %2 = vector.extract_strided_slice %1 {offsets = [0, 1], sizes = [32, 1], strides = [1, 1]} : vector<32x4xf32> to vector<32x1xf32>
    %3 = vector.extract_strided_slice %1 {offsets = [0, 2], sizes = [32, 1], strides = [1, 1]} : vector<32x4xf32> to vector<32x1xf32>
    %4 = vector.extract_strided_slice %1 {offsets = [0, 3], sizes = [32, 1], strides = [1, 1]} : vector<32x4xf32> to vector<32x1xf32>
    %c0_2 = arith.constant 0 : index
    %c0_3 = arith.constant 0 : index
    %5 = vector.load %arg2[%c0_2, %c0_3] : memref<20x128xf32, #tpu.memory_space<vmem>>, vector<16x128xf32>
    %c16 = arith.constant 16 : index
    %c0_4 = arith.constant 0 : index
    %6 = vector.load %arg2[%c16, %c0_4] : memref<20x128xf32, #tpu.memory_space<vmem>>, vector<1x128xf32>
    %c17 = arith.constant 17 : index
    %c0_5 = arith.constant 0 : index
    %7 = vector.load %arg2[%c17, %c0_5] : memref<20x128xf32, #tpu.memory_space<vmem>>, vector<1x128xf32>
    %c18 = arith.constant 18 : index
    %c0_6 = arith.constant 0 : index
    %8 = vector.load %arg2[%c18, %c0_6] : memref<20x128xf32, #tpu.memory_space<vmem>>, vector<1x128xf32>
    %c19 = arith.constant 19 : index
    %c0_7 = arith.constant 0 : index
    %9 = vector.load %arg2[%c19, %c0_7] : memref<20x128xf32, #tpu.memory_space<vmem>>, vector<1x128xf32>
    %10 = vector.broadcast %4 : vector<32x1xf32> to vector<32x128xf32>
    %11 = vector.broadcast %8 : vector<1x128xf32> to vector<32x128xf32>
    %12 = arith.mulf %10, %11 : vector<32x128xf32>
    %13 = vector.broadcast %9 : vector<1x128xf32> to vector<32x128xf32>
    %14 = arith.addf %12, %13 : vector<32x128xf32>
    %15 = tpu.concatenate %5, %5 in 0 : vector<16x128xf32>, vector<16x128xf32> -> vector<32x128xf32>
    %16 = vector.broadcast %2 : vector<32x1xf32> to vector<32x128xf32>
    %17 = vector.broadcast %6 : vector<1x128xf32> to vector<32x128xf32>
    %18 = arith.mulf %16, %17 : vector<32x128xf32>
    %19 = vector.broadcast %3 : vector<32x1xf32> to vector<32x128xf32>
    %20 = vector.broadcast %7 : vector<1x128xf32> to vector<32x128xf32>
    %21 = arith.mulf %19, %20 : vector<32x128xf32>
    %22 = arith.addf %18, %21 : vector<32x128xf32>
    %23 = arith.addf %22, %14 : vector<32x128xf32>
    %24 = arith.addf %23, %15 : vector<32x128xf32>
    %25 = vector.extract_strided_slice %1 {offsets = [0, 0], sizes = [32, 1], strides = [1, 1]} : vector<32x4xf32> to vector<32x1xf32>
    %26 = arith.fptosi %25 : vector<32x1xf32> to vector<32x1xi32>
    %c0_i32 = arith.constant 0 : i32
    %c200_i32 = arith.constant 200 : i32
    %27 = vector.broadcast %c0_i32 : i32 to vector<32x1xi32>
    %28 = arith.maxsi %27, %26 : vector<32x1xi32>
    %29 = vector.broadcast %c200_i32 : i32 to vector<32x1xi32>
    %30 = arith.minsi %29, %28 : vector<32x1xi32>
    %31 = tpu.iota {dimensions = array<i32: 1>} : vector<32x256xi32>
    %32 = vector.broadcast %30 : vector<32x1xi32> to vector<32x256xi32>
    %33 = arith.cmpi eq, %32, %31 : vector<32x256xi32>
    %34 = arith.extui %33 : vector<32x256xi1> to vector<32x256xi32>
    %35 = arith.sitofp %34 : vector<32x256xi32> to vector<32x256xf32>
    %c0_8 = arith.constant 0 : index
    %c0_9 = arith.constant 0 : index
    %36 = vector.load %arg1[%c0_8, %c0_9] : memref<256x128xf32, #tpu.memory_space<vmem>>, vector<256x128xf32>
    %cst = arith.constant dense<0.000000e+00> : vector<32x128xf32>
    %37 = tpu.matmul %35, %36, %cst {dimension_numbers = #tpu.dot_dimension_numbers<[1], [0], [0], [1], [0, 0, 1, 1], [], []>} : vector<32x256xf32>, vector<256x128xf32>, vector<32x128xf32> -> vector<32x128xf32>
    %38 = arith.addf %37, %14 : vector<32x128xf32>
    %c0_10 = arith.constant 0 : index
    %c0_11 = arith.constant 0 : index
    %39 = vector.load %arg3[%c0_10, %c0_11] : memref<258x128xf32, #tpu.memory_space<vmem>>, vector<128x128xf32>
    %c128 = arith.constant 128 : index
    %c0_12 = arith.constant 0 : index
    %40 = vector.load %arg3[%c128, %c0_12] : memref<258x128xf32, #tpu.memory_space<vmem>>, vector<128x128xf32>
    %c256 = arith.constant 256 : index
    %c0_13 = arith.constant 0 : index
    %41 = vector.load %arg3[%c256, %c0_13] : memref<258x128xf32, #tpu.memory_space<vmem>>, vector<1x128xf32>
    %c257 = arith.constant 257 : index
    %c0_14 = arith.constant 0 : index
    %42 = vector.load %arg3[%c257, %c0_14] : memref<258x128xf32, #tpu.memory_space<vmem>>, vector<1x128xf32>
    %cst_15 = arith.constant dense<0.000000e+00> : vector<32x128xf32>
    %43 = tpu.matmul %38, %39, %cst_15 {dimension_numbers = #tpu.dot_dimension_numbers<[1], [0], [0], [1], [0, 0, 1, 1], [], []>} : vector<32x128xf32>, vector<128x128xf32>, vector<32x128xf32> -> vector<32x128xf32>
    %44 = vector.broadcast %41 : vector<1x128xf32> to vector<32x128xf32>
    %45 = arith.addf %43, %44 : vector<32x128xf32>
    %46 = math.tanh %45 : vector<32x128xf32>
    %cst_16 = arith.constant dense<0.000000e+00> : vector<32x128xf32>
    %47 = tpu.matmul %46, %40, %cst_16 {dimension_numbers = #tpu.dot_dimension_numbers<[1], [0], [0], [1], [0, 0, 1, 1], [], []>} : vector<32x128xf32>, vector<128x128xf32>, vector<32x128xf32> -> vector<32x128xf32>
    %48 = vector.broadcast %42 : vector<1x128xf32> to vector<32x128xf32>
    %49 = arith.addf %47, %48 : vector<32x128xf32>
    %50 = tpu.concatenate %24, %46, %49 in 1 : vector<32x128xf32>, vector<32x128xf32>, vector<32x128xf32> -> vector<32x384xf32>
    %51 = vector.shape_cast %50 : vector<32x384xf32> to vector<2x16x384xf32>
    %c0_17 = arith.constant 0 : index
    %c0_18 = arith.constant 0 : index
    %c0_19 = arith.constant 0 : index
    %52 = vector.load %arg4[%c0_17, %c0_18, %c0_19] : memref<2x16x384xf32, #tpu.memory_space<vmem>>, vector<2x16x384xf32>
    tpu.vector_store %arg4[%c0_17, %c0_18, %c0_19], %51 {strides = array<i32>} : memref<2x16x384xf32, #tpu.memory_space<vmem>>, vector<2x16x384xf32>,
    return
  }
}

</mosaic_0001>

<llo_original>
// kernel: dino_forward.3
$region0: #{dino_forward.3}
  #allocation0 [shape = 'u32[]', space=smem, size = 0x4, offset = 0x4, fixed_abs, tag = 'smem constant byte address 0x4 - core index']
  #allocation1 [shape = 'u32[144,128]{1,0:T(1,128)}', space=vmem, size = 0x12000, scoped, tag = 'internal scratch']
  %s0 = inlined_call_operand.vmem [shape: f32[2,16,4], index: 0, kind: input, shape index: {}]
  %s1 = inlined_call_operand.vmem [shape: f32[256,128], index: 1, kind: input, shape index: {}]
  %s2 = inlined_call_operand.vmem [shape: f32[20,128], index: 2, kind: input, shape index: {}]
  %s3 = inlined_call_operand.vmem [shape: f32[258,128], index: 3, kind: input, shape index: {}]
  %s4 = inlined_call_operand.vmem [shape: f32[2,16,384], index: 4, kind: output, shape index: {}]
  %s5 = sld [smem:[#allocation0]]
  $region26: #{dino_forward.3} parent=0
    _
  %s7 = ssub.s32 1, %s5
  %s8 = scalar_select 0, %s7, %s5
  // Predicated region
  $region2: #{dino_forward.3} parent=0 // pred_check
    _
  $region3: #{dino_forward.3} parent=0 // pred_check_branch
    %10 = sbr.rel (0) target = $region5
  $region4: #{dino_forward.3} parent=0 // pred_region
    _
  $region5: #{dino_forward.3} parent=0 // pred_fallthru
    _
  // Predicated region
  $region6: #{dino_forward.3} parent=0 // pred_check
    _
  $region7: #{dino_forward.3} parent=0 // pred_check_branch
    %12 = sbr.rel (0) target = $region9
  $region8: #{dino_forward.3} parent=0 // pred_region
    _
  $region9: #{dino_forward.3} parent=0 // pred_fallthru
    _
  // Predicated region
  $region10: #{dino_forward.3} parent=0 // pred_check
    _
  $region11: #{dino_forward.3} parent=0 // pred_check_branch
    %14 = sbr.rel (0) target = $region13
  $region12: #{dino_forward.3} parent=0 // pred_region
    _
  $region13: #{dino_forward.3} parent=0 // pred_fallthru
    _
  // Predicated region
  $region14: #{dino_forward.3} parent=0 // pred_check
    _
  $region15: #{dino_forward.3} parent=0 // pred_check_branch
    %16 = sbr.rel (0) target = $region17
  $region16: #{dino_forward.3} parent=0 // pred_region
    _
  $region17: #{dino_forward.3} parent=0 // pred_fallthru
    _
  %v17 = vld [vmem:[%s0] sm:$0xff]
  %v18 = vld [vmem:[%s0 + $0x8] sm:$0xff]
  %v19 = vld [vmem:[%s0 + $0x10] sm:$0xff]
  %v20 = vld [vmem:[%s0 + $0x18] sm:$0xff]
  %v21 = vld [vmem:[%s2] sm:$0xff]
  %v22 = vld [vmem:[%s2 + $0x8] sm:$0xff]
  %v23 = vld [vmem:[%s2 + $0x10] sm:$0x1]
  %v24 = vld [vmem:[%s2 + $0x11] sm:$0x1]
  %v25 = vld [vmem:[%s2 + $0x12] sm:$0x1]
  %v26 = vld [vmem:[%s2 + $0x13] sm:$0x1]
  %28 = vset.pattern.permute.xlu0 3
  %29 = vperm.xlu0 %28, %v17
  %v30 = vpop.permute.xlu0 %29
  %33 = vset.pattern.permute.xlu0 3
  %34 = vperm.xlu0 %33, %v18
  %v35 = vpop.permute.xlu0 %34
  %38 = vset.pattern.permute.xlu0 3
  %39 = vperm.xlu0 %38, %v19
  %v40 = vpop.permute.xlu0 %39
  %43 = vset.pattern.permute.xlu0 3
  %44 = vperm.xlu0 %43, %v20
  %v45 = vpop.permute.xlu0 %44
  %v47 = vlaneseq
  %v48 = vshrl.u32 %v47, 7
  %v49 = vsub.s32 0, %v48
  %v50 = vrot.slane %v25, %v49
  %v51 = vmul.f32 %v30, %v50
  %v52 = vmul.f32 %v35, %v50
  %v53 = vmul.f32 %v40, %v50
  %v54 = vmul.f32 %v45, %v50
  %v55 = vlaneseq
  %v56 = vshrl.u32 %v55, 7
  %v57 = vsub.s32 0, %v56
  %v58 = vrot.slane %v26, %v57
  %v59 = vadd.f32 %v51, %v58
  %v60 = vadd.f32 %v52, %v58
  %v61 = vadd.f32 %v53, %v58
  %v62 = vadd.f32 %v54, %v58
  %63 = vset.pattern.permute.xlu0 1
  %64 = vperm.xlu0 %63, %v17
  %v65 = vpop.permute.xlu0 %64
  %67 = vset.pattern.permute.xlu0 1
  %68 = vperm.xlu0 %67, %v18
  %v69 = vpop.permute.xlu0 %68
  %71 = vset.pattern.permute.xlu0 1
  %72 = vperm.xlu0 %71, %v19
  %v73 = vpop.permute.xlu0 %72
  %75 = vset.pattern.permute.xlu0 1
  %76 = vperm.xlu0 %75, %v20
  %v77 = vpop.permute.xlu0 %76
  %v79 = vlaneseq
  %v80 = vshrl.u32 %v79, 7
  %v81 = vsub.s32 0, %v80
  %v82 = vrot.slane %v23, %v81
  %v83 = vmul.f32 %v65, %v82
  %v84 = vmul.f32 %v69, %v82
  %v85 = vmul.f32 %v73, %v82
  %v86 = vmul.f32 %v77, %v82
  %87 = vset.pattern.permute.xlu0 2
  %88 = vperm.xlu0 %87, %v17
  %v89 = vpop.permute.xlu0 %88
  %91 = vset.pattern.permute.xlu0 2
  %92 = vperm.xlu0 %91, %v18
  %v93 = vpop.permute.xlu0 %92
  %95 = vset.pattern.permute.xlu0 2
  %96 = vperm.xlu0 %95, %v19
  %v97 = vpop.permute.xlu0 %96
  %99 = vset.pattern.permute.xlu0 2
  %100 = vperm.xlu0 %99, %v20
  %v101 = vpop.permute.xlu0 %100
  %v103 = vlaneseq
  %v104 = vshrl.u32 %v103, 7
  %v105 = vsub.s32 0, %v104
  %v106 = vrot.slane %v24, %v105
  %v107 = vmul.f32 %v89, %v106
  %v108 = vmul.f32 %v93, %v106
  %v109 = vmul.f32 %v97, %v106
  %v110 = vmul.f32 %v101, %v106
  %v111 = vadd.f32 %v83, %v107
  %v112 = vadd.f32 %v84, %v108
  %v113 = vadd.f32 %v85, %v109
  %v114 = vadd.f32 %v86, %v110
  %v115 = vadd.f32 %v111, %v59
  %v116 = vadd.f32 %v112, %v60
  %v117 = vadd.f32 %v113, %v61
  %v118 = vadd.f32 %v114, %v62
  %v119 = vadd.f32 %v115, %v21
  %v120 = vadd.f32 %v116, %v22
  %v121 = vadd.f32 %v117, %v21
  %v122 = vadd.f32 %v118, %v22
  %v123 = vcvt.f32.s32.to.zero.pseudo %v17
  %v124 = vcvt.f32.s32.to.zero.pseudo %v18
  %v125 = vcvt.f32.s32.to.zero.pseudo %v19
  %v126 = vcvt.f32.s32.to.zero.pseudo %v20
  %vm127 = vcmp.gt.s32.totalorder %v123, 0
  %v128 = vsel %vm127, %v123, 0
  %vm129 = vcmp.gt.s32.totalorder %v124, 0
  %v130 = vsel %vm129, %v124, 0
  %vm131 = vcmp.gt.s32.totalorder %v125, 0
  %v132 = vsel %vm131, %v125, 0
  %vm133 = vcmp.gt.s32.totalorder %v126, 0
  %v134 = vsel %vm133, %v126, 0
  %vm135 = vcmp.lt.s32.totalorder %v128, 200
  %v136 = vsel %vm135, %v128, 200
  %vm137 = vcmp.lt.s32.totalorder %v130, 200
  %v138 = vsel %vm137, %v130, 200
  %vm139 = vcmp.lt.s32.totalorder %v132, 200
  %v140 = vsel %vm139, %v132, 200
  %vm141 = vcmp.lt.s32.totalorder %v134, 200
  %v142 = vsel %vm141, %v134, 200
  %v143 = vlaneseq
  %v144 = vand.u32 %v143, 127
  %v145 = vadd.s32 %v144, 128
  %146 = vset.pattern.permute.xlu0 0
  %147 = vperm.xlu0 %146, %v136
  %v148 = vpop.permute.xlu0 %147
  %149 = vset.pattern.permute.xlu0 0
  %150 = vperm.xlu0 %149, %v138
  %v151 = vpop.permute.xlu0 %150
  %152 = vset.pattern.permute.xlu0 0
  %153 = vperm.xlu0 %152, %v140
  %v154 = vpop.permute.xlu0 %153
  %155 = vset.pattern.permute.xlu0 0
  %156 = vperm.xlu0 %155, %v142
  %v157 = vpop.permute.xlu0 %156
  %vm158 = vcmp.eq.s32.totalorder %v148, %v144
  %vm159 = vcmp.eq.s32.totalorder %v148, %v145
  %vm160 = vcmp.eq.s32.totalorder %v151, %v144
  %vm161 = vcmp.eq.s32.totalorder %v151, %v145
  %vm162 = vcmp.eq.s32.totalorder %v154, %v144
  %vm163 = vcmp.eq.s32.totalorder %v154, %v145
  %vm164 = vcmp.eq.s32.totalorder %v157, %v144
  %vm165 = vcmp.eq.s32.totalorder %v157, %v145
  %v166 = vsel %vm158, 1, 0
  %v167 = vsel %vm159, 1, 0
  %v168 = vsel %vm160, 1, 0
  %v169 = vsel %vm161, 1, 0
  %v170 = vsel %vm162, 1, 0
  %v171 = vsel %vm163, 1, 0
  %v172 = vsel %vm164, 1, 0
  %v173 = vsel %vm165, 1, 0
  %v174 = vcvt.s32.f32 %v166
  %v175 = vcvt.s32.f32 %v167
  %v176 = vcvt.s32.f32 %v168
  %v177 = vcvt.s32.f32 %v169
  %v178 = vcvt.s32.f32 %v170
  %v179 = vcvt.s32.f32 %v171
  %v180 = vcvt.s32.f32 %v172
  %v181 = vcvt.s32.f32 %v173
  %v182 = vld [vmem:[%s1] sm:$0xff]
  %v183 = vld [vmem:[%s1 + $0x8] sm:$0xff]
  %v184 = vld [vmem:[%s1 + $0x10] sm:$0xff]
  %v185 = vld [vmem:[%s1 + $0x18] sm:$0xff]
  %v186 = vld [vmem:[%s1 + $0x20] sm:$0xff]
  %v187 = vld [vmem:[%s1 + $0x28] sm:$0xff]
  %v188 = vld [vmem:[%s1 + $0x30] sm:$0xff]
  %v189 = vld [vmem:[%s1 + $0x38] sm:$0xff]
  %v190 = vld [vmem:[%s1 + $0x40] sm:$0xff]
  %v191 = vld [vmem:[%s1 + $0x48] sm:$0xff]
  %v192 = vld [vmem:[%s1 + $0x50] sm:$0xff]
  %v193 = vld [vmem:[%s1 + $0x58] sm:$0xff]
  %v194 = vld [vmem:[%s1 + $0x60] sm:$0xff]
  %v195 = vld [vmem:[%s1 + $0x68] sm:$0xff]
  %v196 = vld [vmem:[%s1 + $0x70] sm:$0xff]
  %v197 = vld [vmem:[%s1 + $0x78] sm:$0xff]
  %v198 = vld [vmem:[%s1 + $0x80] sm:$0xff]
  %v199 = vld [vmem:[%s1 + $0x88] sm:$0xff]
  %v200 = vld [vmem:[%s1 + $0x90] sm:$0xff]
  %v201 = vld [vmem:[%s1 + $0x98] sm:$0xff]
  %v202 = vld [vmem:[%s1 + $0xa0] sm:$0xff]
  %v203 = vld [vmem:[%s1 + $0xa8] sm:$0xff]
  %v204 = vld [vmem:[%s1 + $0xb0] sm:$0xff]
  %v205 = vld [vmem:[%s1 + $0xb8] sm:$0xff]
  %v206 = vld [vmem:[%s1 + $0xc0] sm:$0xff]
  %v207 = vld [vmem:[%s1 + $0xc8] sm:$0xff]
  %v208 = vld [vmem:[%s1 + $0xd0] sm:$0xff]
  %v209 = vld [vmem:[%s1 + $0xd8] sm:$0xff]
  %v210 = vld [vmem:[%s1 + $0xe0] sm:$0xff]
  %v211 = vld [vmem:[%s1 + $0xe8] sm:$0xff]
  %v212 = vld [vmem:[%s1 + $0xf0] sm:$0xff]
  %v213 = vld [vmem:[%s1 + $0xf8] sm:$0xff]
  %214 = vmatprep.subr.mxu0 0.0
  %215 = vmatpush1.msra.mxu0 %v197
  %216 = vmatprep.subr.mxu0 0.0
  %217 = vmatpush1.msra.mxu0 %v196
  %218 = vmatprep.subr.mxu0 0.0
  %219 = vmatpush1.msra.mxu0 %v195
  %220 = vmatprep.subr.mxu0 0.0
  %221 = vmatpush1.msra.mxu0 %v194
  %222 = vmatprep.subr.mxu0 0.0
  %223 = vmatpush1.msra.mxu0 %v193
  %224 = vmatprep.subr.mxu0 0.0
  %225 = vmatpush1.msra.mxu0 %v192
  %226 = vmatprep.subr.mxu0 0.0
  %227 = vmatpush1.msra.mxu0 %v191
  %228 = vmatprep.subr.mxu0 0.0
  %229 = vmatpush1.msra.mxu0 %v190
  %230 = vmatprep.subr.mxu0 0.0
  %231 = vmatpush1.msra.mxu0 %v189
  %232 = vmatprep.subr.mxu0 0.0
  %233 = vmatpush1.msra.mxu0 %v188
  %234 = vmatprep.subr.mxu0 0.0
  %235 = vmatpush1.msra.mxu0 %v187
  %236 = vmatprep.subr.mxu0 0.0
  %237 = vmatpush1.msra.mxu0 %v186
  %238 = vmatprep.subr.mxu0 0.0
  %239 = vmatpush1.msra.mxu0 %v185
  %240 = vmatprep.subr.mxu0 0.0
  %241 = vmatpush1.msra.mxu0 %v184
  %242 = vmatprep.subr.mxu0 0.0
  %243 = vmatpush1.msra.mxu0 %v183
  %244 = vmatprep.subr.mxu0 0.0
  %245 = vmatpush1.msra.mxu0 %v182
  %246 = vmatprep.subr.mxu0 0.0
  %247 = vmatpush2.msra.mxu0 %v213
  %248 = vmatprep.subr.mxu0 0.0
  %249 = vmatpush2.msra.mxu0 %v212
  %250 = vmatprep.subr.mxu0 0.0
  %251 = vmatpush2.msra.mxu0 %v211
  %252 = vmatprep.subr.mxu0 0.0
  %253 = vmatpush2.msra.mxu0 %v210
  %254 = vmatprep.subr.mxu0 0.0
  %255 = vmatpush2.msra.mxu0 %v209
  %256 = vmatprep.subr.mxu0 0.0
  %257 = vmatpush2.msra.mxu0 %v208
  %258 = vmatprep.subr.mxu0 0.0
  %259 = vmatpush2.msra.mxu0 %v207
  %260 = vmatprep.subr.mxu0 0.0
  %261 = vmatpush2.msra.mxu0 %v206
  %262 = vmatprep.subr.mxu0 0.0
  %263 = vmatpush2.msra.mxu0 %v205
  %264 = vmatprep.subr.mxu0 0.0
  %265 = vmatpush2.msra.mxu0 %v204
  %266 = vmatprep.subr.mxu0 0.0
  %267 = vmatpush2.msra.mxu0 %v203
  %268 = vmatprep.subr.mxu0 0.0
  %269 = vmatpush2.msra.mxu0 %v202
  %270 = vmatprep.subr.mxu0 0.0
  %271 = vmatpush2.msra.mxu0 %v201
  %272 = vmatprep.subr.mxu0 0.0
  %273 = vmatpush2.msra.mxu0 %v200
  %274 = vmatprep.subr.mxu0 0.0
  %275 = vmatpush2.msra.mxu0 %v199
  %276 = vmatprep.subr.mxu0 0.0
  %277 = vmatpush2.msra.mxu0 %v198
  %278 = vmatprep.mubr.f32.mxu0 %v175
  %279 = vmatmul.mubr.f32.gmra.mxu0 %v174
  %v280 = vpop.f32.mrf.mxu0
  %v281 = vadd.f32 %v59, %v280
  %v282 = vpop.f32.mrf.mxu0
  %283 = vmatprep.mubr.f32.mxu0 %v177
  %284 = vmatmul.mubr.f32.gmra.mxu0 %v176
  %v285 = vpop.f32.mrf.mxu0
  %v286 = vadd.f32 %v60, %v285
  %v287 = vpop.f32.mrf.mxu0
  %288 = vmatprep.mubr.f32.mxu0 %v179
  %289 = vmatmul.mubr.f32.gmra.mxu0 %v178
  %v290 = vpop.f32.mrf.mxu0
  %v291 = vadd.f32 %v61, %v290
  %v292 = vpop.f32.mrf.mxu0
  %293 = vmatprep.mubr.f32.mxu0 %v181
  %294 = vmatmul.mubr.f32.gmra.mxu0 %v180
  %v295 = vpop.f32.mrf.mxu0
  %v296 = vadd.f32 %v62, %v295
  %v297 = vpop.f32.mrf.mxu0
  %298 = vdwg.mxu0
  %v299 = vld [vmem:[%s3] sm:$0xff]
  %v300 = vld [vmem:[%s3 + $0x8] sm:$0xff]
  %v301 = vld [vmem:[%s3 + $0x10] sm:$0xff]
  %v302 = vld [vmem:[%s3 + $0x18] sm:$0xff]
  %v303 = vld [vmem:[%s3 + $0x20] sm:$0xff]
  %v304 = vld [vmem:[%s3 + $0x28] sm:$0xff]
  %v305 = vld [vmem:[%s3 + $0x30] sm:$0xff]
  %v306 = vld [vmem:[%s3 + $0x38] sm:$0xff]
  %v307 = vld [vmem:[%s3 + $0x40] sm:$0xff]
  %v308 = vld [vmem:[%s3 + $0x48] sm:$0xff]
  %v309 = vld [vmem:[%s3 + $0x50] sm:$0xff]
  %v310 = vld [vmem:[%s3 + $0x58] sm:$0xff]
  %v311 = vld [vmem:[%s3 + $0x60] sm:$0xff]
  %v312 = vld [vmem:[%s3 + $0x68] sm:$0xff]
  %v313 = vld [vmem:[%s3 + $0x70] sm:$0xff]
  %v314 = vld [vmem:[%s3 + $0x78] sm:$0xff]
  %v315 = vld [vmem:[%s3 + $0x80] sm:$0xff]
  %v316 = vld [vmem:[%s3 + $0x88] sm:$0xff]
  %v317 = vld [vmem:[%s3 + $0x90] sm:$0xff]
  %v318 = vld [vmem:[%s3 + $0x98] sm:$0xff]
  %v319 = vld [vmem:[%s3 + $0xa0] sm:$0xff]
  %v320 = vld [vmem:[%s3 + $0xa8] sm:$0xff]
  %v321 = vld [vmem:[%s3 + $0xb0] sm:$0xff]
  %v322 = vld [vmem:[%s3 + $0xb8] sm:$0xff]
  %v323 = vld [vmem:[%s3 + $0xc0] sm:$0xff]
  %v324 = vld [vmem:[%s3 + $0xc8] sm:$0xff]
  %v325 = vld [vmem:[%s3 + $0xd0] sm:$0xff]
  %v326 = vld [vmem:[%s3 + $0xd8] sm:$0xff]
  %v327 = vld [vmem:[%s3 + $0xe0] sm:$0xff]
  %v328 = vld [vmem:[%s3 + $0xe8] sm:$0xff]
  %v329 = vld [vmem:[%s3 + $0xf0] sm:$0xff]
  %v330 = vld [vmem:[%s3 + $0xf8] sm:$0xff]
  %v331 = vld [vmem:[%s3 + $0x100] sm:$0x1]
  %v332 = vld [vmem:[%s3 + $0x101] sm:$0x1]
  %v333 = vlaneseq
  %v334 = vshrl.u32 %v333, 7
  %v335 = vsub.s32 0, %v334
  %v336 = vrot.slane %v331, %v335
  %337 = vmatprep.subr.mxu0 0.0
  %338 = vmatpush1.msra.mxu0 %v314
  %339 = vmatprep.subr.mxu0 0.0
  %340 = vmatpush1.msra.mxu0 %v313
  %341 = vmatprep.subr.mxu0 0.0
  %342 = vmatpush1.msra.mxu0 %v312
  %343 = vmatprep.subr.mxu0 0.0
  %344 = vmatpush1.msra.mxu0 %v311
  %345 = vmatprep.subr.mxu0 0.0
  %346 = vmatpush1.msra.mxu0 %v310
  %347 = vmatprep.subr.mxu0 0.0
  %348 = vmatpush1.msra.mxu0 %v309
  %349 = vmatprep.subr.mxu0 0.0
  %350 = vmatpush1.msra.mxu0 %v308
  %351 = vmatprep.subr.mxu0 0.0
  %352 = vmatpush1.msra.mxu0 %v307
  %353 = vmatprep.subr.mxu0 0.0
  %354 = vmatpush1.msra.mxu0 %v306
  %355 = vmatprep.subr.mxu0 0.0
  %356 = vmatpush1.msra.mxu0 %v305
  %357 = vmatprep.subr.mxu0 0.0
  %358 = vmatpush1.msra.mxu0 %v304
  %359 = vmatprep.subr.mxu0 0.0
  %360 = vmatpush1.msra.mxu0 %v303
  %361 = vmatprep.subr.mxu0 0.0
  %362 = vmatpush1.msra.mxu0 %v302
  %363 = vmatprep.subr.mxu0 0.0
  %364 = vmatpush1.msra.mxu0 %v301
  %365 = vmatprep.subr.mxu0 0.0
  %366 = vmatpush1.msra.mxu0 %v300
  %367 = vmatprep.subr.mxu0 0.0
  %368 = vmatpush1.msra.mxu0 %v299
  %369 = vmatprep.subr.mxu0 0.0
  %370 = vmatpush2.msra.mxu0 0.0
  %371 = vmatprep.subr.mxu0 0.0
  %372 = vmatpush2.msra.mxu0 0.0
  %373 = vmatprep.subr.mxu0 0.0
  %374 = vmatpush2.msra.mxu0 0.0
  %375 = vmatprep.subr.mxu0 0.0
  %376 = vmatpush2.msra.mxu0 0.0
  %377 = vmatprep.subr.mxu0 0.0
  %378 = vmatpush2.msra.mxu0 0.0
  %379 = vmatprep.subr.mxu0 0.0
  %380 = vmatpush2.msra.mxu0 0.0
  %381 = vmatprep.subr.mxu0 0.0
  %382 = vmatpush2.msra.mxu0 0.0
  %383 = vmatprep.subr.mxu0 0.0
  %384 = vmatpush2.msra.mxu0 0.0
  %385 = vmatprep.subr.mxu0 0.0
  %386 = vmatpush2.msra.mxu0 0.0
  %387 = vmatprep.subr.mxu0 0.0
  %388 = vmatpush2.msra.mxu0 0.0
  %389 = vmatprep.subr.mxu0 0.0
  %390 = vmatpush2.msra.mxu0 0.0
  %391 = vmatprep.subr.mxu0 0.0
  %392 = vmatpush2.msra.mxu0 0.0
  %393 = vmatprep.subr.mxu0 0.0
  %394 = vmatpush2.msra.mxu0 0.0
  %395 = vmatprep.subr.mxu0 0.0
  %396 = vmatpush2.msra.mxu0 0.0
  %397 = vmatprep.subr.mxu0 0.0
  %398 = vmatpush2.msra.mxu0 0.0
  %399 = vmatprep.subr.mxu0 0.0
  %400 = vmatpush2.msra.mxu0 0.0
  %401 = vmatprep.mubr.f32.mxu0 0.0
  %402 = vmatmul.mubr.f32.gmra.mxu0 %v281
  %v403 = vpop.f32.mrf.mxu0
  %v404 = vadd.f32 %v336, %v403
  %v405 = vpop.f32.mrf.mxu0
  %406 = vmatprep.mubr.f32.mxu0 0.0
  %407 = vmatmul.mubr.f32.gmra.mxu0 %v286
  %v408 = vpop.f32.mrf.mxu0
  %v409 = vadd.f32 %v336, %v408
  %v410 = vpop.f32.mrf.mxu0
  %411 = vmatprep.mubr.f32.mxu0 0.0
  %412 = vmatmul.mubr.f32.gmra.mxu0 %v291
  %v413 = vpop.f32.mrf.mxu0
  %v414 = vadd.f32 %v336, %v413
  %v415 = vpop.f32.mrf.mxu0
  %416 = vmatprep.mubr.f32.mxu0 0.0
  %417 = vmatmul.mubr.f32.gmra.mxu0 %v296
  %v418 = vpop.f32.mrf.mxu0
  %v419 = vadd.f32 %v336, %v418
  %v420 = vpop.f32.mrf.mxu0
  %421 = vdwg.mxu0
  %v422 = vtanh.pop %v404
  %v423 = vtanh.pop %v409
  %v424 = vtanh.pop %v414
  %v425 = vtanh.pop %v419
  %v426 = vlaneseq
  %v427 = vshrl.u32 %v426, 7
  %v428 = vsub.s32 0, %v427
  %v429 = vrot.slane %v332, %v428
  %430 = vmatprep.subr.mxu0 0.0
  %431 = vmatpush1.msra.mxu0 %v330
  %432 = vmatprep.subr.mxu0 0.0
  %433 = vmatpush1.msra.mxu0 %v329
  %434 = vmatprep.subr.mxu0 0.0
  %435 = vmatpush1.msra.mxu0 %v328
  %436 = vmatprep.subr.mxu0 0.0
  %437 = vmatpush1.msra.mxu0 %v327
  %438 = vmatprep.subr.mxu0 0.0
  %439 = vmatpush1.msra.mxu0 %v326
  %440 = vmatprep.subr.mxu0 0.0
  %441 = vmatpush1.msra.mxu0 %v325
  %442 = vmatprep.subr.mxu0 0.0
  %443 = vmatpush1.msra.mxu0 %v324
  %444 = vmatprep.subr.mxu0 0.0
  %445 = vmatpush1.msra.mxu0 %v323
  %446 = vmatprep.subr.mxu0 0.0
  %447 = vmatpush1.msra.mxu0 %v322
  %448 = vmatprep.subr.mxu0 0.0
  %449 = vmatpush1.msra.mxu0 %v321
  %450 = vmatprep.subr.mxu0 0.0
  %451 = vmatpush1.msra.mxu0 %v320
  %452 = vmatprep.subr.mxu0 0.0
  %453 = vmatpush1.msra.mxu0 %v319
  %454 = vmatprep.subr.mxu0 0.0
  %455 = vmatpush1.msra.mxu0 %v318
  %456 = vmatprep.subr.mxu0 0.0
  %457 = vmatpush1.msra.mxu0 %v317
  %458 = vmatprep.subr.mxu0 0.0
  %459 = vmatpush1.msra.mxu0 %v316
  %460 = vmatprep.subr.mxu0 0.0
  %461 = vmatpush1.msra.mxu0 %v315
  %462 = vmatprep.subr.mxu0 0.0
  %463 = vmatpush2.msra.mxu0 0.0
  %464 = vmatprep.subr.mxu0 0.0
  %465 = vmatpush2.msra.mxu0 0.0
  %466 = vmatprep.subr.mxu0 0.0
  %467 = vmatpush2.msra.mxu0 0.0
  %468 = vmatprep.subr.mxu0 0.0
  %469 = vmatpush2.msra.mxu0 0.0
  %470 = vmatprep.subr.mxu0 0.0
  %471 = vmatpush2.msra.mxu0 0.0
  %472 = vmatprep.subr.mxu0 0.0
  %473 = vmatpush2.msra.mxu0 0.0
  %474 = vmatprep.subr.mxu0 0.0
  %475 = vmatpush2.msra.mxu0 0.0
  %476 = vmatprep.subr.mxu0 0.0
  %477 = vmatpush2.msra.mxu0 0.0
  %478 = vmatprep.subr.mxu0 0.0
  %479 = vmatpush2.msra.mxu0 0.0
  %480 = vmatprep.subr.mxu0 0.0
  %481 = vmatpush2.msra.mxu0 0.0
  %482 = vmatprep.subr.mxu0 0.0
  %483 = vmatpush2.msra.mxu0 0.0
  %484 = vmatprep.subr.mxu0 0.0
  %485 = vmatpush2.msra.mxu0 0.0
  %486 = vmatprep.subr.mxu0 0.0
  %487 = vmatpush2.msra.mxu0 0.0
  %488 = vmatprep.subr.mxu0 0.0
  %489 = vmatpush2.msra.mxu0 0.0
  %490 = vmatprep.subr.mxu0 0.0
  %491 = vmatpush2.msra.mxu0 0.0
  %492 = vmatprep.subr.mxu0 0.0
  %493 = vmatpush2.msra.mxu0 0.0
  %494 = vmatprep.mubr.f32.mxu0 0.0
  %495 = vmatmul.mubr.f32.gmra.mxu0 %v422
  %v496 = vpop.f32.mrf.mxu0
  %v497 = vadd.f32 %v429, %v496
  %v498 = vpop.f32.mrf.mxu0
  %499 = vmatprep.mubr.f32.mxu0 0.0
  %500 = vmatmul.mubr.f32.gmra.mxu0 %v423
  %v501 = vpop.f32.mrf.mxu0
  %v502 = vadd.f32 %v429, %v501
  %v503 = vpop.f32.mrf.mxu0
  %504 = vmatprep.mubr.f32.mxu0 0.0
  %505 = vmatmul.mubr.f32.gmra.mxu0 %v424
  %v506 = vpop.f32.mrf.mxu0
  %v507 = vadd.f32 %v429, %v506
  %v508 = vpop.f32.mrf.mxu0
  %509 = vmatprep.mubr.f32.mxu0 0.0
  %510 = vmatmul.mubr.f32.gmra.mxu0 %v425
  %v511 = vpop.f32.mrf.mxu0
  %v512 = vadd.f32 %v429, %v511
  %v513 = vpop.f32.mrf.mxu0
  %514 = vdwg.mxu0
  %515 = vst [vmem:[%s4] sm:$0xff] %v119
  %516 = vst [vmem:[%s4 + $0x8] sm:$0xff] %v422
  %517 = vst [vmem:[%s4 + $0x10] sm:$0xff] %v497
  %518 = vst [vmem:[%s4 + $0x18] sm:$0xff] %v120
  %519 = vst [vmem:[%s4 + $0x20] sm:$0xff] %v423
  %520 = vst [vmem:[%s4 + $0x28] sm:$0xff] %v502
  %521 = vst [vmem:[%s4 + $0x30] sm:$0xff] %v121
  %522 = vst [vmem:[%s4 + $0x38] sm:$0xff] %v424
  %523 = vst [vmem:[%s4 + $0x40] sm:$0xff] %v507
  %524 = vst [vmem:[%s4 + $0x48] sm:$0xff] %v122
  %525 = vst [vmem:[%s4 + $0x50] sm:$0xff] %v425
  %526 = vst [vmem:[%s4 + $0x58] sm:$0xff] %v512
  // Predicated region
  $region18: #{dino_forward.3} parent=0 // pred_check
    _
  $region19: #{dino_forward.3} parent=0 // pred_check_branch
    %528 = sbr.rel (0) target = $region21
  $region20: #{dino_forward.3} parent=0 // pred_region
    _
  $region21: #{dino_forward.3} parent=0 // pred_fallthru
    _
  // Predicated region
  $region22: #{dino_forward.3} parent=0 // pred_check
    _
  $region23: #{dino_forward.3} parent=0 // pred_check_branch
    %530 = sbr.rel (0) target = $region25
  $region24: #{dino_forward.3} parent=0 // pred_region
    _
  $region25: #{dino_forward.3} parent=0 // pred_fallthru
    _

// kernel: dino_forward.2
$region0: #{dino_forward.2}
  #allocation0 [shape = 'u32[]', space=smem, size = 0x4, offset = 0x4, fixed_abs, tag = 'smem constant byte address 0x4 - core index']
  #allocation1 [shape = 'u32[144,128]{1,0:T(1,128)}', space=vmem, size = 0x12000, scoped, tag = 'internal scratch']
  %s0 = inlined_call_operand.vmem [shape: f32[2,24,16], index: 0, kind: input, shape index: {}]
  %s1 = inlined_call_operand.vmem [shape: f32[166,128], index: 1, kind: input, shape index: {}]
  %s2 = inlined_call_operand.vmem [shape: f32[2,24,128], index: 2, kind: output, shape index: {}]
  %s3 = sld [smem:[#allocation0]]
  $region18: #{dino_forward.2} parent=0
    _
  %s5 = ssub.s32 1, %s3
  %s6 = scalar_select 0, %s5, %s3
  // Predicated region
  $region2: #{dino_forward.2} parent=0 // pred_check
    _
  $region3: #{dino_forward.2} parent=0 // pred_check_branch
    %8 = sbr.rel (0) target = $region5
  $region4: #{dino_forward.2} parent=0 // pred_region
    _
  $region5: #{dino_forward.2} parent=0 // pred_fallthru
    _
  // Predicated region
  $region6: #{dino_forward.2} parent=0 // pred_check
    _
  $region7: #{dino_forward.2} parent=0 // pred_check_branch
    %10 = sbr.rel (0) target = $region9
  $region8: #{dino_forward.2} parent=0 // pred_region
    _
  $region9: #{dino_forward.2} parent=0 // pred_fallthru
    _
  %v11 = vld [vmem:[%s1] sm:$0xff]
  %v12 = vld [vmem:[%s1 + $0x8] sm:$0xff]
  %v13 = vld [vmem:[%s1 + $0x10] sm:$0xff]
  %v14 = vld [vmem:[%s1 + $0x18] sm:$0xff]
  %v15 = vld [vmem:[%s1 + $0x20] sm:$0xff]
  %v16 = vld [vmem:[%s1 + $0x28] sm:$0xff]
  %v17 = vld [vmem:[%s1 + $0x30] sm:$0xff]
  %v18 = vld [vmem:[%s1 + $0x38] sm:$0xff]
  %v19 = vld [vmem:[%s1 + $0x40] sm:$0xff]
  %v20 = vld [vmem:[%s1 + $0x48] sm:$0xff]
  %v21 = vld [vmem:[%s1 + $0x50] sm:$0xff]
  %v22 = vld [vmem:[%s1 + $0x58] sm:$0xff]
  %v23 = vld [vmem:[%s1 + $0x60] sm:$0xff]
  %v24 = vld [vmem:[%s1 + $0x68] sm:$0xff]
  %v25 = vld [vmem:[%s1 + $0x70] sm:$0xff]
  %v26 = vld [vmem:[%s1 + $0x78] sm:$0xff]
  %v27 = vld [vmem:[%s1 + $0x80] sm:$0xff]
  %v28 = vld [vmem:[%s1 + $0x88] sm:$0xff]
  %v29 = vld [vmem:[%s1 + $0xa0] sm:$0x1]
  %v30 = vld [vmem:[%s1 + $0xa1] sm:$0x1]
  %v31 = vld [vmem:[%s1 + $0xa2] sm:$0x1]
  %v32 = vld [vmem:[%s0] sm:$0xff]
  %v33 = vld [vmem:[%s0 + $0x8] sm:$0xff]
  %v34 = vld [vmem:[%s0 + $0x18] sm:$0xff]
  %v35 = vld [vmem:[%s0 + $0x20] sm:$0xff]
  %v36 = vlaneseq
  %v37 = vshrl.u32 %v36, 7
  %v38 = vsub.s32 0, %v37
  %v39 = vrot.slane %v29, %v38
  %vm40 = vcmask 130048
  %v42 = vsel %vm40, %v32, 0
  %v45 = vsel %vm40, %v33, 0
  %v48 = vsel %vm40, %v34, 0
  %v51 = vsel %vm40, %v35, 0
  %53 = vmatprep.subr.mxu0 0.0
  %54 = vmatpush1.msra.mxu0 0.0
  %55 = vmatprep.subr.mxu0 0.0
  %56 = vmatpush1.msra.mxu0 0.0
  %57 = vmatprep.subr.mxu0 0.0
  %58 = vmatpush1.msra.mxu0 0.0
  %59 = vmatprep.subr.mxu0 0.0
  %60 = vmatpush1.msra.mxu0 0.0
  %61 = vmatprep.subr.mxu0 0.0
  %62 = vmatpush1.msra.mxu0 0.0
  %63 = vmatprep.subr.mxu0 0.0
  %64 = vmatpush1.msra.mxu0 0.0
  %65 = vmatprep.subr.mxu0 0.0
  %66 = vmatpush1.msra.mxu0 0.0
  %67 = vmatprep.subr.mxu0 0.0
  %68 = vmatpush1.msra.mxu0 0.0
  %69 = vmatprep.subr.mxu0 0.0
  %70 = vmatpush1.msra.mxu0 0.0
  %71 = vmatprep.subr.mxu0 0.0
  %72 = vmatpush1.msra.mxu0 0.0
  %73 = vmatprep.subr.mxu0 0.0
  %74 = vmatpush1.msra.mxu0 0.0
  %75 = vmatprep.subr.mxu0 0.0
  %76 = vmatpush1.msra.mxu0 0.0
  %77 = vmatprep.subr.mxu0 0.0
  %78 = vmatpush1.msra.mxu0 0.0
  %79 = vmatprep.subr.mxu0 0.0
  %80 = vmatpush1.msra.mxu0 0.0
  %81 = vmatprep.subr.mxu0 0.0
  %82 = vmatpush1.msra.mxu0 %v28
  %83 = vmatprep.subr.mxu0 0.0
  %84 = vmatpush1.msra.mxu0 %v27
  %85 = vmatprep.subr.mxu0 0.0
  %86 = vmatpush2.msra.mxu0 0.0
  %87 = vmatprep.subr.mxu0 0.0
  %88 = vmatpush2.msra.mxu0 0.0
  %89 = vmatprep.subr.mxu0 0.0
  %90 = vmatpush2.msra.mxu0 0.0
  %91 = vmatprep.subr.mxu0 0.0
  %92 = vmatpush2.msra.mxu0 0.0
  %93 = vmatprep.subr.mxu0 0.0
  %94 = vmatpush2.msra.mxu0 0.0
  %95 = vmatprep.subr.mxu0 0.0
  %96 = vmatpush2.msra.mxu0 0.0
  %97 = vmatprep.subr.mxu0 0.0
  %98 = vmatpush2.msra.mxu0 0.0
  %99 = vmatprep.subr.mxu0 0.0
  %100 = vmatpush2.msra.mxu0 0.0
  %101 = vmatprep.subr.mxu0 0.0
  %102 = vmatpush2.msra.mxu0 0.0
  %103 = vmatprep.subr.mxu0 0.0
  %104 = vmatpush2.msra.mxu0 0.0
  %105 = vmatprep.subr.mxu0 0.0
  %106 = vmatpush2.msra.mxu0 0.0
  %107 = vmatprep.subr.mxu0 0.0
  %108 = vmatpush2.msra.mxu0 0.0
  %109 = vmatprep.subr.mxu0 0.0
  %110 = vmatpush2.msra.mxu0 0.0
  %111 = vmatprep.subr.mxu0 0.0
  %112 = vmatpush2.msra.mxu0 0.0
  %113 = vmatprep.subr.mxu0 0.0
  %114 = vmatpush2.msra.mxu0 0.0
  %115 = vmatprep.subr.mxu0 0.0
  %116 = vmatpush2.msra.mxu0 0.0
  %117 = vmatprep.mubr.f32.mxu0 0.0
  %118 = vmatmul.mubr.f32.gmra.mxu0 %v42
  %v119 = vpop.f32.mrf.mxu0
  %v120 = vadd.f32 %v39, %v119
  %v121 = vpop.f32.mrf.mxu0
  %122 = vmatprep.mubr.f32.mxu0 0.0
  %123 = vmatmul.mubr.f32.gmra.mxu0 %v45
  %v124 = vpop.f32.mrf.mxu0
  %v125 = vadd.f32 %v39, %v124
  %v126 = vpop.f32.mrf.mxu0
  %127 = vmatprep.mubr.f32.mxu0 0.0
  %128 = vmatmul.mubr.f32.gmra.mxu0 %v48
  %v129 = vpop.f32.mrf.mxu0
  %v130 = vadd.f32 %v39, %v129
  %v131 = vpop.f32.mrf.mxu0
  %132 = vmatprep.mubr.f32.mxu0 0.0
  %133 = vmatmul.mubr.f32.gmra.mxu0 %v51
  %v134 = vpop.f32.mrf.mxu0
  %v135 = vadd.f32 %v39, %v134
  %v136 = vpop.f32.mrf.mxu0
  %137 = vdwg.mxu0
  %v138 = vadd.f32 %v120, %v125
  %v139 = vrot.slane %v138, 4
  %v140 = vadd.f32 %v138, %v139
  %v141 = vrot.slane %v140, 2
  %v142 = vadd.f32 %v140, %v141
  %v143 = vrot.slane %v142, 1
  %v144 = vadd.f32 %v142, %v143
  %v145 = vadd.f32 %v130, %v135
  %v146 = vrot.slane %v145, 4
  %v147 = vadd.f32 %v145, %v146
  %v148 = vrot.slane %v147, 2
  %v149 = vadd.f32 %v147, %v148
  %v150 = vrot.slane %v149, 1
  %v151 = vadd.f32 %v149, %v150
  %vm154 = vcmask 1041409
  %v155 = vsel %vm154, %v151, %v144
  %157 = vmatprep.subr.mxu0 0.0
  %158 = vmatpush1.msra.mxu0 %v26
  %159 = vmatprep.subr.mxu0 0.0
  %160 = vmatpush1.msra.mxu0 %v25
  %161 = vmatprep.subr.mxu0 0.0
  %162 = vmatpush1.msra.mxu0 %v24
  %163 = vmatprep.subr.mxu0 0.0
  %164 = vmatpush1.msra.mxu0 %v23
  %165 = vmatprep.subr.mxu0 0.0
  %166 = vmatpush1.msra.mxu0 %v22
  %167 = vmatprep.subr.mxu0 0.0
  %168 = vmatpush1.msra.mxu0 %v21
  %169 = vmatprep.subr.mxu0 0.0
  %170 = vmatpush1.msra.mxu0 %v20
  %171 = vmatprep.subr.mxu0 0.0
  %172 = vmatpush1.msra.mxu0 %v19
  %173 = vmatprep.subr.mxu0 0.0
  %174 = vmatpush1.msra.mxu0 %v18
  %175 = vmatprep.subr.mxu0 0.0
  %176 = vmatpush1.msra.mxu0 %v17
  %177 = vmatprep.subr.mxu0 0.0
  %178 = vmatpush1.msra.mxu0 %v16
  %179 = vmatprep.subr.mxu0 0.0
  %180 = vmatpush1.msra.mxu0 %v15
  %181 = vmatprep.subr.mxu0 0.0
  %182 = vmatpush1.msra.mxu0 %v14
  %183 = vmatprep.subr.mxu0 0.0
  %184 = vmatpush1.msra.mxu0 %v13
  %185 = vmatprep.subr.mxu0 0.0
  %186 = vmatpush1.msra.mxu0 %v12
  %187 = vmatprep.subr.mxu0 0.0
  %188 = vmatpush1.msra.mxu0 %v11
  %189 = vmatprep.subr.mxu0 0.0
  %190 = vmatpush2.msra.mxu0 0.0
  %191 = vmatprep.subr.mxu0 0.0
  %192 = vmatpush2.msra.mxu0 0.0
  %193 = vmatprep.subr.mxu0 0.0
  %194 = vmatpush2.msra.mxu0 0.0
  %195 = vmatprep.subr.mxu0 0.0
  %196 = vmatpush2.msra.mxu0 0.0
  %197 = vmatprep.subr.mxu0 0.0
  %198 = vmatpush2.msra.mxu0 0.0
  %199 = vmatprep.subr.mxu0 0.0
  %200 = vmatpush2.msra.mxu0 0.0
  %201 = vmatprep.subr.mxu0 0.0
  %202 = vmatpush2.msra.mxu0 0.0
  %203 = vmatprep.subr.mxu0 0.0
  %204 = vmatpush2.msra.mxu0 0.0
  %205 = vmatprep.subr.mxu0 0.0
  %206 = vmatpush2.msra.mxu0 0.0
  %207 = vmatprep.subr.mxu0 0.0
  %208 = vmatpush2.msra.mxu0 0.0
  %209 = vmatprep.subr.mxu0 0.0
  %210 = vmatpush2.msra.mxu0 0.0
  %211 = vmatprep.subr.mxu0 0.0
  %212 = vmatpush2.msra.mxu0 0.0
  %213 = vmatprep.subr.mxu0 0.0
  %214 = vmatpush2.msra.mxu0 0.0
  %215 = vmatprep.subr.mxu0 0.0
  %216 = vmatpush2.msra.mxu0 0.0
  %217 = vmatprep.subr.mxu0 0.0
  %218 = vmatpush2.msra.mxu0 0.0
  %219 = vmatprep.subr.mxu0 0.0
  %220 = vmatpush2.msra.mxu0 0.0
  %221 = vmatprep.mubr.f32.mxu0 0.0
  %222 = vmatmul.mubr.f32.gmra.mxu0 %v155
  %v223 = vpop.f32.mrf.mxu0
  %v224 = vadd.f32 0.0, %v223
  %v225 = vpop.f32.mrf.mxu0
  %226 = vdwg.mxu0
  %v227 = vmul.f32 %v224, 0.0625
  %v230 = vunpack.c.l.s4 1966171168
  %v231 = vunpack.c.0.s8 %v230
  %v232 = vlaneseq
  %v233 = vshrl.u32 %v232, 7
  %v234 = vsub.s32 %v231, %v233
  %v235 = vrot.slane %v227, %v234
  %v236 = vcombine.high %v235, %v235
  %v238 = vunpack.c.l.s4 1966171168
  %v239 = vunpack.c.0.s8 %v238
  %v240 = vlaneseq
  %v241 = vshrl.u32 %v240, 7
  %v242 = vsub.s32 %v239, %v241
  %v243 = vrot.slane %v235, %v242
  %v245 = vunpack.c.l.s4 1966171168
  %v246 = vunpack.c.0.s8 %v245
  %v247 = vlaneseq
  %v248 = vshrl.u32 %v247, 7
  %v249 = vsub.s32 %v246, %v248
  %v250 = vrot.slane %v236, %v249
  %v251 = vlaneseq
  %v252 = vshrl.u32 %v251, 7
  %v253 = vsub.s32 0, %v252
  %v254 = vrot.slane %v243, %v253
  %v255 = vlaneseq
  %v256 = vshrl.u32 %v255, 7
  %v257 = vsub.s32 0, %v256
  %v258 = vrot.slane %v250, %v257
  %v261 = vsub.f32 %v120, %v254
  %v262 = vsub.f32 %v125, %v254
  %v263 = vsub.f32 %v130, %v258
  %v264 = vsub.f32 %v135, %v258
  %v265 = vmul.f32 %v261, %v261
  %v266 = vmul.f32 %v262, %v262
  %v267 = vmul.f32 %v263, %v263
  %v268 = vmul.f32 %v264, %v264
  %v269 = vadd.f32 %v265, %v266
  %v270 = vrot.slane %v269, 4
  %v271 = vadd.f32 %v269, %v270
  %v272 = vrot.slane %v271, 2
  %v273 = vadd.f32 %v271, %v272
  %v274 = vrot.slane %v273, 1
  %v275 = vadd.f32 %v273, %v274
  %v276 = vadd.f32 %v267, %v268
  %v277 = vrot.slane %v276, 4
  %v278 = vadd.f32 %v276, %v277
  %v279 = vrot.slane %v278, 2
  %v280 = vadd.f32 %v278, %v279
  %v281 = vrot.slane %v280, 1
  %v282 = vadd.f32 %v280, %v281
  %v285 = vsel %vm154, %v282, %v275
  %287 = vmatprep.subr.mxu0 0.0
  %288 = vmatpush1.msra.mxu0 %v26
  %289 = vmatprep.subr.mxu0 0.0
  %290 = vmatpush1.msra.mxu0 %v25
  %291 = vmatprep.subr.mxu0 0.0
  %292 = vmatpush1.msra.mxu0 %v24
  %293 = vmatprep.subr.mxu0 0.0
  %294 = vmatpush1.msra.mxu0 %v23
  %295 = vmatprep.subr.mxu0 0.0
  %296 = vmatpush1.msra.mxu0 %v22
  %297 = vmatprep.subr.mxu0 0.0
  %298 = vmatpush1.msra.mxu0 %v21
  %299 = vmatprep.subr.mxu0 0.0
  %300 = vmatpush1.msra.mxu0 %v20
  %301 = vmatprep.subr.mxu0 0.0
  %302 = vmatpush1.msra.mxu0 %v19
  %303 = vmatprep.subr.mxu0 0.0
  %304 = vmatpush1.msra.mxu0 %v18
  %305 = vmatprep.subr.mxu0 0.0
  %306 = vmatpush1.msra.mxu0 %v17
  %307 = vmatprep.subr.mxu0 0.0
  %308 = vmatpush1.msra.mxu0 %v16
  %309 = vmatprep.subr.mxu0 0.0
  %310 = vmatpush1.msra.mxu0 %v15
  %311 = vmatprep.subr.mxu0 0.0
  %312 = vmatpush1.msra.mxu0 %v14
  %313 = vmatprep.subr.mxu0 0.0
  %314 = vmatpush1.msra.mxu0 %v13
  %315 = vmatprep.subr.mxu0 0.0
  %316 = vmatpush1.msra.mxu0 %v12
  %317 = vmatprep.subr.mxu0 0.0
  %318 = vmatpush1.msra.mxu0 %v11
  %319 = vmatprep.subr.mxu0 0.0
  %320 = vmatpush2.msra.mxu0 0.0
  %321 = vmatprep.subr.mxu0 0.0
  %322 = vmatpush2.msra.mxu0 0.0
  %323 = vmatprep.subr.mxu0 0.0
  %324 = vmatpush2.msra.mxu0 0.0
  %325 = vmatprep.subr.mxu0 0.0
  %326 = vmatpush2.msra.mxu0 0.0
  %327 = vmatprep.subr.mxu0 0.0
  %328 = vmatpush2.msra.mxu0 0.0
  %329 = vmatprep.subr.mxu0 0.0
  %330 = vmatpush2.msra.mxu0 0.0
  %331 = vmatprep.subr.mxu0 0.0
  %332 = vmatpush2.msra.mxu0 0.0
  %333 = vmatprep.subr.mxu0 0.0
  %334 = vmatpush2.msra.mxu0 0.0
  %335 = vmatprep.subr.mxu0 0.0
  %336 = vmatpush2.msra.mxu0 0.0
  %337 = vmatprep.subr.mxu0 0.0
  %338 = vmatpush2.msra.mxu0 0.0
  %339 = vmatprep.subr.mxu0 0.0
  %340 = vmatpush2.msra.mxu0 0.0
  %341 = vmatprep.subr.mxu0 0.0
  %342 = vmatpush2.msra.mxu0 0.0
  %343 = vmatprep.subr.mxu0 0.0
  %344 = vmatpush2.msra.mxu0 0.0
  %345 = vmatprep.subr.mxu0 0.0
  %346 = vmatpush2.msra.mxu0 0.0
  %347 = vmatprep.subr.mxu0 0.0
  %348 = vmatpush2.msra.mxu0 0.0
  %349 = vmatprep.subr.mxu0 0.0
  %350 = vmatpush2.msra.mxu0 0.0
  %351 = vmatprep.mubr.f32.mxu0 0.0
  %352 = vmatmul.mubr.f32.gmra.mxu0 %v285
  %v353 = vpop.f32.mrf.mxu0
  %v354 = vadd.f32 0.0, %v353
  %v355 = vpop.f32.mrf.mxu0
  %356 = vdwg.mxu0
  %v357 = vmul.f32 %v354, 0.0625
  %v358 = vadd.f32 %v357, 1e-05
  %v359 = vrsqrt.pop %v358
  %v362 = vunpack.c.l.s4 1966171168
  %v363 = vunpack.c.0.s8 %v362
  %v364 = vlaneseq
  %v365 = vshrl.u32 %v364, 7
  %v366 = vsub.s32 %v363, %v365
  %v367 = vrot.slane %v359, %v366
  %v368 = vcombine.high %v367, %v367
  %v370 = vunpack.c.l.s4 1966171168
  %v371 = vunpack.c.0.s8 %v370
  %v372 = vlaneseq
  %v373 = vshrl.u32 %v372, 7
  %v374 = vsub.s32 %v371, %v373
  %v375 = vrot.slane %v367, %v374
  %v377 = vunpack.c.l.s4 1966171168
  %v378 = vunpack.c.0.s8 %v377
  %v379 = vlaneseq
  %v380 = vshrl.u32 %v379, 7
  %v381 = vsub.s32 %v378, %v380
  %v382 = vrot.slane %v368, %v381
  %v383 = vlaneseq
  %v384 = vshrl.u32 %v383, 7
  %v385 = vsub.s32 0, %v384
  %v386 = vrot.slane %v375, %v385
  %v387 = vlaneseq
  %v388 = vshrl.u32 %v387, 7
  %v389 = vsub.s32 0, %v388
  %v390 = vrot.slane %v382, %v389
  %v393 = vmul.f32 %v261, %v386
  %v394 = vmul.f32 %v262, %v386
  %v395 = vmul.f32 %v263, %v390
  %v396 = vmul.f32 %v264, %v390
  %v397 = vlaneseq
  %v398 = vshrl.u32 %v397, 7
  %v399 = vsub.s32 0, %v398
  %v400 = vrot.slane %v30, %v399
  %v401 = vmul.f32 %v393, %v400
  %v402 = vmul.f32 %v394, %v400
  %v403 = vmul.f32 %v395, %v400
  %v404 = vmul.f32 %v396, %v400
  %v405 = vlaneseq
  %v406 = vshrl.u32 %v405, 7
  %v407 = vsub.s32 0, %v406
  %v408 = vrot.slane %v31, %v407
  %v409 = vadd.f32 %v401, %v408
  %v410 = vadd.f32 %v402, %v408
  %v411 = vadd.f32 %v403, %v408
  %v412 = vadd.f32 %v404, %v408
  %413 = vst [vmem:[%s2] sm:$0xff] %v409
  %414 = vst [vmem:[%s2 + $0x8] sm:$0xff] %v410
  %415 = vst [vmem:[%s2 + $0x18] sm:$0xff] %v411
  %416 = vst [vmem:[%s2 + $0x20] sm:$0xff] %v412
  %v417 = vld [vmem:[%s1 + $0x90] sm:$0xff]
  %v418 = vld [vmem:[%s1 + $0x98] sm:$0xff]
  %v419 = vld [vmem:[%s1 + $0xa3] sm:$0x1]
  %v420 = vld [vmem:[%s1 + $0xa4] sm:$0x1]
  %v421 = vld [vmem:[%s1 + $0xa5] sm:$0x1]
  %v422 = vld [vmem:[%s0 + $0x10] sm:$0xff]
  %v423 = vld [vmem:[%s0 + $0x28] sm:$0xff]
  %v424 = vlaneseq
  %v425 = vshrl.u32 %v424, 7
  %v426 = vsub.s32 0, %v425
  %v427 = vrot.slane %v419, %v426
  %v429 = vsel %vm40, %v422, 0
  %v432 = vsel %vm40, %v423, 0
  %434 = vmatprep.subr.mxu0 0.0
  %435 = vmatpush1.msra.mxu0 0.0
  %436 = vmatprep.subr.mxu0 0.0
  %437 = vmatpush1.msra.mxu0 0.0
  %438 = vmatprep.subr.mxu0 0.0
  %439 = vmatpush1.msra.mxu0 0.0
  %440 = vmatprep.subr.mxu0 0.0
  %441 = vmatpush1.msra.mxu0 0.0
  %442 = vmatprep.subr.mxu0 0.0
  %443 = vmatpush1.msra.mxu0 0.0
  %444 = vmatprep.subr.mxu0 0.0
  %445 = vmatpush1.msra.mxu0 0.0
  %446 = vmatprep.subr.mxu0 0.0
  %447 = vmatpush1.msra.mxu0 0.0
  %448 = vmatprep.subr.mxu0 0.0
  %449 = vmatpush1.msra.mxu0 0.0
  %450 = vmatprep.subr.mxu0 0.0
  %451 = vmatpush1.msra.mxu0 0.0
  %452 = vmatprep.subr.mxu0 0.0
  %453 = vmatpush1.msra.mxu0 0.0
  %454 = vmatprep.subr.mxu0 0.0
  %455 = vmatpush1.msra.mxu0 0.0
  %456 = vmatprep.subr.mxu0 0.0
  %457 = vmatpush1.msra.mxu0 0.0
  %458 = vmatprep.subr.mxu0 0.0
  %459 = vmatpush1.msra.mxu0 0.0
  %460 = vmatprep.subr.mxu0 0.0
  %461 = vmatpush1.msra.mxu0 0.0
  %462 = vmatprep.subr.mxu0 0.0
  %463 = vmatpush1.msra.mxu0 %v418
  %464 = vmatprep.subr.mxu0 0.0
  %465 = vmatpush1.msra.mxu0 %v417
  %466 = vmatprep.subr.mxu0 0.0
  %467 = vmatpush2.msra.mxu0 0.0
  %468 = vmatprep.subr.mxu0 0.0
  %469 = vmatpush2.msra.mxu0 0.0
  %470 = vmatprep.subr.mxu0 0.0
  %471 = vmatpush2.msra.mxu0 0.0
  %472 = vmatprep.subr.mxu0 0.0
  %473 = vmatpush2.msra.mxu0 0.0
  %474 = vmatprep.subr.mxu0 0.0
  %475 = vmatpush2.msra.mxu0 0.0
  %476 = vmatprep.subr.mxu0 0.0
  %477 = vmatpush2.msra.mxu0 0.0
  %478 = vmatprep.subr.mxu0 0.0
  %479 = vmatpush2.msra.mxu0 0.0
  %480 = vmatprep.subr.mxu0 0.0
  %481 = vmatpush2.msra.mxu0 0.0
  %482 = vmatprep.subr.mxu0 0.0
  %483 = vmatpush2.msra.mxu0 0.0
  %484 = vmatprep.subr.mxu0 0.0
  %485 = vmatpush2.msra.mxu0 0.0
  %486 = vmatprep.subr.mxu0 0.0
  %487 = vmatpush2.msra.mxu0 0.0
  %488 = vmatprep.subr.mxu0 0.0
  %489 = vmatpush2.msra.mxu0 0.0
  %490 = vmatprep.subr.mxu0 0.0
  %491 = vmatpush2.msra.mxu0 0.0
  %492 = vmatprep.subr.mxu0 0.0
  %493 = vmatpush2.msra.mxu0 0.0
  %494 = vmatprep.subr.mxu0 0.0
  %495 = vmatpush2.msra.mxu0 0.0
  %496 = vmatprep.subr.mxu0 0.0
  %497 = vmatpush2.msra.mxu0 0.0
  %498 = vmatprep.mubr.f32.mxu0 0.0
  %499 = vmatmul.mubr.f32.gmra.mxu0 %v429
  %v500 = vpop.f32.mrf.mxu0
  %v501 = vadd.f32 %v427, %v500
  %v502 = vpop.f32.mrf.mxu0
  %503 = vmatprep.mubr.f32.mxu0 0.0
  %504 = vmatmul.mubr.f32.gmra.mxu0 %v432
  %v505 = vpop.f32.mrf.mxu0
  %v506 = vadd.f32 %v427, %v505
  %v507 = vpop.f32.mrf.mxu0
  %508 = vdwg.mxu0
  %v509 = vrot.slane %v501, 4
  %v510 = vadd.f32 %v501, %v509
  %v511 = vrot.slane %v510, 2
  %v512 = vadd.f32 %v510, %v511
  %v513 = vrot.slane %v512, 1
  %v514 = vadd.f32 %v512, %v513
  %v515 = vrot.slane %v506, 4
  %v516 = vadd.f32 %v506, %v515
  %v517 = vrot.slane %v516, 2
  %v518 = vadd.f32 %v516, %v517
  %v519 = vrot.slane %v518, 1
  %v520 = vadd.f32 %v518, %v519
  %v523 = vsel %vm154, %v520, %v514
  %525 = vmatprep.subr.mxu0 0.0
  %526 = vmatpush1.msra.mxu0 %v26
  %527 = vmatprep.subr.mxu0 0.0
  %528 = vmatpush1.msra.mxu0 %v25
  %529 = vmatprep.subr.mxu0 0.0
  %530 = vmatpush1.msra.mxu0 %v24
  %531 = vmatprep.subr.mxu0 0.0
  %532 = vmatpush1.msra.mxu0 %v23
  %533 = vmatprep.subr.mxu0 0.0
  %534 = vmatpush1.msra.mxu0 %v22
  %535 = vmatprep.subr.mxu0 0.0
  %536 = vmatpush1.msra.mxu0 %v21
  %537 = vmatprep.subr.mxu0 0.0
  %538 = vmatpush1.msra.mxu0 %v20
  %539 = vmatprep.subr.mxu0 0.0
  %540 = vmatpush1.msra.mxu0 %v19
  %541 = vmatprep.subr.mxu0 0.0
  %542 = vmatpush1.msra.mxu0 %v18
  %543 = vmatprep.subr.mxu0 0.0
  %544 = vmatpush1.msra.mxu0 %v17
  %545 = vmatprep.subr.mxu0 0.0
  %546 = vmatpush1.msra.mxu0 %v16
  %547 = vmatprep.subr.mxu0 0.0
  %548 = vmatpush1.msra.mxu0 %v15
  %549 = vmatprep.subr.mxu0 0.0
  %550 = vmatpush1.msra.mxu0 %v14
  %551 = vmatprep.subr.mxu0 0.0
  %552 = vmatpush1.msra.mxu0 %v13
  %553 = vmatprep.subr.mxu0 0.0
  %554 = vmatpush1.msra.mxu0 %v12
  %555 = vmatprep.subr.mxu0 0.0
  %556 = vmatpush1.msra.mxu0 %v11
  %557 = vmatprep.subr.mxu0 0.0
  %558 = vmatpush2.msra.mxu0 0.0
  %559 = vmatprep.subr.mxu0 0.0
  %560 = vmatpush2.msra.mxu0 0.0
  %561 = vmatprep.subr.mxu0 0.0
  %562 = vmatpush2.msra.mxu0 0.0
  %563 = vmatprep.subr.mxu0 0.0
  %564 = vmatpush2.msra.mxu0 0.0
  %565 = vmatprep.subr.mxu0 0.0
  %566 = vmatpush2.msra.mxu0 0.0
  %567 = vmatprep.subr.mxu0 0.0
  %568 = vmatpush2.msra.mxu0 0.0
  %569 = vmatprep.subr.mxu0 0.0
  %570 = vmatpush2.msra.mxu0 0.0
  %571 = vmatprep.subr.mxu0 0.0
  %572 = vmatpush2.msra.mxu0 0.0
  %573 = vmatprep.subr.mxu0 0.0
  %574 = vmatpush2.msra.mxu0 0.0
  %575 = vmatprep.subr.mxu0 0.0
  %576 = vmatpush2.msra.mxu0 0.0
  %577 = vmatprep.subr.mxu0 0.0
  %578 = vmatpush2.msra.mxu0 0.0
  %579 = vmatprep.subr.mxu0 0.0
  %580 = vmatpush2.msra.mxu0 0.0
  %581 = vmatprep.subr.mxu0 0.0
  %582 = vmatpush2.msra.mxu0 0.0
  %583 = vmatprep.subr.mxu0 0.0
  %584 = vmatpush2.msra.mxu0 0.0
  %585 = vmatprep.subr.mxu0 0.0
  %586 = vmatpush2.msra.mxu0 0.0
  %587 = vmatprep.subr.mxu0 0.0
  %588 = vmatpush2.msra.mxu0 0.0
  %589 = vmatprep.mubr.f32.mxu0 0.0
  %590 = vmatmul.mubr.f32.gmra.mxu0 %v523
  %v591 = vpop.f32.mrf.mxu0
  %v592 = vadd.f32 0.0, %v591
  %v593 = vpop.f32.mrf.mxu0
  %594 = vdwg.mxu0
  %v595 = vmul.f32 %v592, 0.125
  %v598 = vunpack.c.l.s4 1966171168
  %v599 = vunpack.c.0.s8 %v598
  %v600 = vlaneseq
  %v601 = vshrl.u32 %v600, 7
  %v602 = vsub.s32 %v599, %v601
  %v603 = vrot.slane %v595, %v602
  %v604 = vcombine.high %v603, %v603
  %v606 = vunpack.c.l.s4 1966171168
  %v607 = vunpack.c.0.s8 %v606
  %v608 = vlaneseq
  %v609 = vshrl.u32 %v608, 7
  %v610 = vsub.s32 %v607, %v609
  %v611 = vrot.slane %v603, %v610
  %v613 = vunpack.c.l.s4 1966171168
  %v614 = vunpack.c.0.s8 %v613
  %v615 = vlaneseq
  %v616 = vshrl.u32 %v615, 7
  %v617 = vsub.s32 %v614, %v616
  %v618 = vrot.slane %v604, %v617
  %v619 = vlaneseq
  %v620 = vshrl.u32 %v619, 7
  %v621 = vsub.s32 0, %v620
  %v622 = vrot.slane %v611, %v621
  %v623 = vlaneseq
  %v624 = vshrl.u32 %v623, 7
  %v625 = vsub.s32 0, %v624
  %v626 = vrot.slane %v618, %v625
  %v629 = vsub.f32 %v501, %v622
  %v630 = vsub.f32 %v506, %v626
  %v631 = vmul.f32 %v629, %v629
  %v632 = vmul.f32 %v630, %v630
  %v633 = vrot.slane %v631, 4
  %v634 = vadd.f32 %v631, %v633
  %v635 = vrot.slane %v634, 2
  %v636 = vadd.f32 %v634, %v635
  %v637 = vrot.slane %v636, 1
  %v638 = vadd.f32 %v636, %v637
  %v639 = vrot.slane %v632, 4
  %v640 = vadd.f32 %v632, %v639
  %v641 = vrot.slane %v640, 2
  %v642 = vadd.f32 %v640, %v641
  %v643 = vrot.slane %v642, 1
  %v644 = vadd.f32 %v642, %v643
  %v647 = vsel %vm154, %v644, %v638
  %649 = vmatprep.subr.mxu0 0.0
  %650 = vmatpush1.msra.mxu0 %v26
  %651 = vmatprep.subr.mxu0 0.0
  %652 = vmatpush1.msra.mxu0 %v25
  %653 = vmatprep.subr.mxu0 0.0
  %654 = vmatpush1.msra.mxu0 %v24
  %655 = vmatprep.subr.mxu0 0.0
  %656 = vmatpush1.msra.mxu0 %v23
  %657 = vmatprep.subr.mxu0 0.0
  %658 = vmatpush1.msra.mxu0 %v22
  %659 = vmatprep.subr.mxu0 0.0
  %660 = vmatpush1.msra.mxu0 %v21
  %661 = vmatprep.subr.mxu0 0.0
  %662 = vmatpush1.msra.mxu0 %v20
  %663 = vmatprep.subr.mxu0 0.0
  %664 = vmatpush1.msra.mxu0 %v19
  %665 = vmatprep.subr.mxu0 0.0
  %666 = vmatpush1.msra.mxu0 %v18
  %667 = vmatprep.subr.mxu0 0.0
  %668 = vmatpush1.msra.mxu0 %v17
  %669 = vmatprep.subr.mxu0 0.0
  %670 = vmatpush1.msra.mxu0 %v16
  %671 = vmatprep.subr.mxu0 0.0
  %672 = vmatpush1.msra.mxu0 %v15
  %673 = vmatprep.subr.mxu0 0.0
  %674 = vmatpush1.msra.mxu0 %v14
  %675 = vmatprep.subr.mxu0 0.0
  %676 = vmatpush1.msra.mxu0 %v13
  %677 = vmatprep.subr.mxu0 0.0
  %678 = vmatpush1.msra.mxu0 %v12
  %679 = vmatprep.subr.mxu0 0.0
  %680 = vmatpush1.msra.mxu0 %v11
  %681 = vmatprep.subr.mxu0 0.0
  %682 = vmatpush2.msra.mxu0 0.0
  %683 = vmatprep.subr.mxu0 0.0
  %684 = vmatpush2.msra.mxu0 0.0
  %685 = vmatprep.subr.mxu0 0.0
  %686 = vmatpush2.msra.mxu0 0.0
  %687 = vmatprep.subr.mxu0 0.0
  %688 = vmatpush2.msra.mxu0 0.0
  %689 = vmatprep.subr.mxu0 0.0
  %690 = vmatpush2.msra.mxu0 0.0
  %691 = vmatprep.subr.mxu0 0.0
  %692 = vmatpush2.msra.mxu0 0.0
  %693 = vmatprep.subr.mxu0 0.0
  %694 = vmatpush2.msra.mxu0 0.0
  %695 = vmatprep.subr.mxu0 0.0
  %696 = vmatpush2.msra.mxu0 0.0
  %697 = vmatprep.subr.mxu0 0.0
  %698 = vmatpush2.msra.mxu0 0.0
  %699 = vmatprep.subr.mxu0 0.0
  %700 = vmatpush2.msra.mxu0 0.0
  %701 = vmatprep.subr.mxu0 0.0
  %702 = vmatpush2.msra.mxu0 0.0
  %703 = vmatprep.subr.mxu0 0.0
  %704 = vmatpush2.msra.mxu0 0.0
  %705 = vmatprep.subr.mxu0 0.0
  %706 = vmatpush2.msra.mxu0 0.0
  %707 = vmatprep.subr.mxu0 0.0
  %708 = vmatpush2.msra.mxu0 0.0
  %709 = vmatprep.subr.mxu0 0.0
  %710 = vmatpush2.msra.mxu0 0.0
  %711 = vmatprep.subr.mxu0 0.0
  %712 = vmatpush2.msra.mxu0 0.0
  %713 = vmatprep.mubr.f32.mxu0 0.0
  %714 = vmatmul.mubr.f32.gmra.mxu0 %v647
  %v715 = vpop.f32.mrf.mxu0
  %v716 = vadd.f32 0.0, %v715
  %v717 = vpop.f32.mrf.mxu0
  %718 = vdwg.mxu0
  %v719 = vmul.f32 %v716, 0.125
  %v720 = vadd.f32 %v719, 1e-05
  %v721 = vrsqrt.pop %v720
  %v724 = vunpack.c.l.s4 1966171168
  %v725 = vunpack.c.0.s8 %v724
  %v726 = vlaneseq
  %v727 = vshrl.u32 %v726, 7
  %v728 = vsub.s32 %v725, %v727
  %v729 = vrot.slane %v721, %v728
  %v730 = vcombine.high %v729, %v729
  %v732 = vunpack.c.l.s4 1966171168
  %v733 = vunpack.c.0.s8 %v732
  %v734 = vlaneseq
  %v735 = vshrl.u32 %v734, 7
  %v736 = vsub.s32 %v733, %v735
  %v737 = vrot.slane %v729, %v736
  %v739 = vunpack.c.l.s4 1966171168
  %v740 = vunpack.c.0.s8 %v739
  %v741 = vlaneseq
  %v742 = vshrl.u32 %v741, 7
  %v743 = vsub.s32 %v740, %v742
  %v744 = vrot.slane %v730, %v743
  %v745 = vlaneseq
  %v746 = vshrl.u32 %v745, 7
  %v747 = vsub.s32 0, %v746
  %v748 = vrot.slane %v737, %v747
  %v749 = vlaneseq
  %v750 = vshrl.u32 %v749, 7
  %v751 = vsub.s32 0, %v750
  %v752 = vrot.slane %v744, %v751
  %v755 = vmul.f32 %v629, %v748
  %v756 = vmul.f32 %v630, %v752
  %v757 = vlaneseq
  %v758 = vshrl.u32 %v757, 7
  %v759 = vsub.s32 0, %v758
  %v760 = vrot.slane %v420, %v759
  %v761 = vmul.f32 %v755, %v760
  %v762 = vmul.f32 %v756, %v760
  %v763 = vlaneseq
  %v764 = vshrl.u32 %v763, 7
  %v765 = vsub.s32 0, %v764
  %v766 = vrot.slane %v421, %v765
  %v767 = vadd.f32 %v761, %v766
  %v768 = vadd.f32 %v762, %v766
  %769 = vst [vmem:[%s2 + $0x10] sm:$0xff] %v767
  %770 = vst [vmem:[%s2 + $0x28] sm:$0xff] %v768
  // Predicated region
  $region10: #{dino_forward.2} parent=0 // pred_check
    _
  $region11: #{dino_forward.2} parent=0 // pred_check_branch
    %772 = sbr.rel (0) target = $region13
  $region12: #{dino_forward.2} parent=0 // pred_region
    _
  $region13: #{dino_forward.2} parent=0 // pred_fallthru
    _
  // Predicated region
  $region14: #{dino_forward.2} parent=0 // pred_check
    _
  $region15: #{dino_forward.2} parent=0 // pred_check_branch
    %774 = sbr.rel (0) target = $region17
  $region16: #{dino_forward.2} parent=0 // pred_region
    _
  $region17: #{dino_forward.2} parent=0 // pred_fallthru
    _

</llo_original>
